<compile_context>
chip_gen: v7x
topology: tpu7x:2x2x1
jax: 0.10.0
libtpu: 0.0.40
codegen_flags: <defaults>
</compile_context>

<pallas_src>
import functools

import jax
import jax.numpy as jnp
from jax.experimental import pallas as pl
from jax.experimental.pallas import tpu as pltpu


# ------------------------- helpers -------------------------

def _round_up(x, m):
    return (x + m - 1) // m * m


def _vmem_budget_bytes():
    """0.85 * per-core VMEM capacity (fallback: assume v7x-sized 64 MiB)."""
    cap = None
    try:
        info = pltpu.get_tpu_info()
        cap = getattr(info, "vmem_capacity_bytes", None)
    except Exception:
        cap = None
    if not cap or cap <= 0:
        cap = 64 * 1024 * 1024
    return max(32 * 1024 * 1024, min(int(cap * 0.85), 112 * 1024 * 1024))


def _cost_estimate(n_pad, f_pads, depth, itemsize, a_reads):
    flops = 0
    for i in range(depth):
        flops += 2 * n_pad * f_pads[i] * 2 * f_pads[i + 1]      # h @ [W|Wr]
        flops += 2 * n_pad * n_pad * f_pads[i + 1]               # A @ hw
    transcendentals = n_pad * f_pads[-1] + n_pad                 # exp + log
    bytes_accessed = (
        a_reads * n_pad * n_pad * itemsize
        + n_pad * f_pads[0] * itemsize
        + sum(f_pads[i] * 2 * f_pads[i + 1] * itemsize for i in range(depth))
        + sum(4 * f_pads[i + 1] for i in range(depth))
        + 4 * n_pad * f_pads[-1])
    return pl.CostEstimate(flops=flops, transcendentals=transcendentals,
                           bytes_accessed=bytes_accessed)


def _log_softmax_masked(h, nclass):
    """log_softmax over the first `nclass` (valid) columns; f32 epilogue."""
    col = jax.lax.broadcasted_iota(jnp.int32, h.shape, 1)
    hm = jnp.where(col < nclass, h, -1e30)            # scalar fill, one select
    m = jnp.max(hm, axis=1, keepdims=True)
    shifted = hm - m
    # exp(-1e30 - m) underflows to exactly 0.0 in f32 -> no second mask needed
    lse = jnp.log(jnp.sum(jnp.exp(shifted), axis=1, keepdims=True))
    return shifted - lse


# ------------------------- kernel: fully VMEM-resident -------------------------

def _grcn_resident_kernel(*refs, depth, f_out_pads, nclass, compute_dtype):
    """Fused GRCN-lin forward, everything resident in VMEM (no grid).

    refs layout:
      refs[0]              : A_hat            (N_pad, N_pad)      compute_dtype
      refs[1]              : X                (N_pad, F0_pad)     compute_dtype
      refs[2 : 2+depth]    : Wcat_i = [W|Wr]  (Fi_pad, 2*Fo_pad)  compute_dtype
      refs[2+depth : 2+2d] : bcomb_i = b+br   (1, Fo_pad)         float32
      refs[-1]             : output           (N_pad, Flast_pad)  float32
    """
    a_ref = refs[0]
    x_ref = refs[1]
    w_refs = refs[2:2 + depth]
    b_refs = refs[2 + depth:2 + 2 * depth]
    o_ref = refs[2 + 2 * depth]

    a = a_ref[...]                            # stays in compute_dtype for MXU

    h = x_ref[...].astype(jnp.float32)
    for i in range(depth):
        fo = f_out_pads[i]
        hc = h.astype(compute_dtype)
        # one wide matmul: h @ [W | Wr]  (compute_dtype in, f32 accumulate)
        hcat = jnp.dot(hc, w_refs[i][...], preferred_element_type=jnp.float32)
        hw = hcat[:, :fo]                     # conv branch (pre-aggregation)
        hr = hcat[:, fo:]                     # residual branch (final)
        agg = jnp.dot(a, hw.astype(compute_dtype),
                      preferred_element_type=jnp.float32)
        h = agg + hr + b_refs[i][...]         # f32 epilogue
        if i != depth - 1:
            h = jnp.maximum(h, 0.0)
        # dropout: eval mode -> identity

    o_ref[...] = _log_softmax_masked(h, nclass).astype(o_ref.dtype)


# ------------------------- kernel: row-tiled / pipelined -------------------------

def _grcn_tiled_kernel(*refs, depth, f_pads, nclass, tm, compute_dtype):
    """GRCN-lin forward with A_hat streamed in row tiles.

    grid = (depth, n_row_tiles)  -- both axes 'arbitrary' (scratch carries
    cross-tile / cross-layer state).

    refs layout: inputs as in the resident kernel but A is a (tm, N_pad) row
    tile; then output (tm, Flast_pad); then scratch:
      hw_ref : (N_pad, 2*fo_max) f32   h @ [W|Wr] for the current layer
      h_ref  : (N_pad, fh_max)   f32   inter-layer activations
    """
    a_ref = refs[0]
    x_ref = refs[1]
    w_refs = refs[2:2 + depth]
    b_refs = refs[2 + depth:2 + 2 * depth]
    o_ref = refs[2 + 2 * depth]
    hw_ref = refs[2 + 2 * depth + 1]
    h_ref = refs[2 + 2 * depth + 2]

    layer = pl.program_id(0)
    r = pl.program_id(1)
    row0 = pl.multiple_of(r * tm, tm)

    a_tile = a_ref[...]                        # (tm, N_pad) compute_dtype

    for i in range(depth):
        fi = f_pads[i]
        fo = f_pads[i + 1]
        is_last = (i == depth - 1)

        @pl.when(layer == i)
        def _(i=i, fi=fi, fo=fo, is_last=is_last):
            # First row tile of this layer: materialize h @ [W|Wr] for ALL rows.
            @pl.when(r == 0)
            def _():
                h_full = x_ref[...] if i == 0 else h_ref[:, :fi]
                hw_ref[:, :2 * fo] = jnp.dot(
                    h_full.astype(compute_dtype), w_refs[i][...],
                    preferred_element_type=jnp.float32)

            hw_conv = hw_ref[:, :fo].astype(compute_dtype)
            agg = jnp.dot(a_tile, hw_conv, preferred_element_type=jnp.float32)
            hr = hw_ref[pl.ds(row0, tm), fo:2 * fo]
            out = agg + hr + b_refs[i][...]

            if not is_last:
                h_ref[pl.ds(row0, tm), :fo] = jnp.maximum(out, 0.0)
            else:
                o_ref[...] = _log_softmax_masked(out, nclass).astype(o_ref.dtype)


# ------------------------- wrapper: prepare (hoisted) + apply -------------------------

def grcn_prepare(x, a_hat, params, *, compute_dtype=jnp.bfloat16):
    """Pad + cast graph/feature/weight slabs ONCE (hoisted out of per-call path)."""
    n, nfeat = x.shape
    depth = len(params["conv_w"])
    dims = [nfeat] + [params["conv_w"][i].shape[1] for i in range(depth)]
    nclass = dims[-1]

    n_pad = _round_up(max(n, 8), 128)
    f_pads = [_round_up(d, 128) for d in dims]

    a_pad = jnp.zeros((n_pad, n_pad), jnp.float32).at[:n, :n].set(
        jnp.asarray(a_hat, jnp.float32)).astype(compute_dtype)
    x_pad = jnp.zeros((n_pad, f_pads[0]), jnp.float32).at[:n, :nfeat].set(
        jnp.asarray(x, jnp.float32)).astype(compute_dtype)

    w_cats, b_combs = [], []
    for i in range(depth):
        fi, fo = dims[i], dims[i + 1]
        fi_p, fo_p = f_pads[i], f_pads[i + 1]
        wcat = jnp.zeros((fi_p, 2 * fo_p), jnp.float32)
        wcat = wcat.at[:fi, :fo].set(params["conv_w"][i])
        wcat = wcat.at[:fi, fo_p:fo_p + fo].set(params["res_w"][i])
        w_cats.append(wcat.astype(compute_dtype))
        bcomb = jnp.zeros((1, fo_p), jnp.float32)
        bcomb = bcomb.at[0, :fo].set(params["conv_b"][i] + params["res_b"][i])
        b_combs.append(bcomb)

    cfg = dict(n=n, nclass=nclass, depth=depth, n_pad=n_pad,
               f_pads=tuple(f_pads), compute_dtype=jnp.dtype(compute_dtype))
    return cfg, (a_pad, x_pad, tuple(w_cats), tuple(b_combs))


def grcn_apply(cfg, arrays, *, force_tiled=False, row_tile=None, a_tile_buffers=2):
    """Run the fused GRCN forward on pre-padded slabs (see grcn_prepare)."""
    a_pad, x_pad, w_cats, b_combs = arrays
    n, nclass, depth = cfg["n"], cfg["nclass"], cfg["depth"]
    n_pad, f_pads = cfg["n_pad"], cfg["f_pads"]
    compute_dtype = cfg["compute_dtype"]
    itemsize = jnp.dtype(compute_dtype).itemsize

    budget = _vmem_budget_bytes()
    fo_max = max(f_pads[1:])
    fh_mid = f_pads[1:depth]
    h_cols = max(fh_mid) if fh_mid else f_pads[-1]

    w_bytes = sum(f_pads[i] * 2 * f_pads[i + 1] * itemsize for i in range(depth))
    b_bytes = sum(4 * f_pads[i + 1] for i in range(depth))

    resident_bytes = (
        n_pad * n_pad * itemsize             # A_hat
        + n_pad * f_pads[0] * itemsize       # X
        + w_bytes + b_bytes
        + 4 * n_pad * f_pads[-1]             # output (f32)
        + 4 * n_pad * 2 * fo_max             # hcat intermediate (f32)
        + 4 * n_pad * max(f_pads))           # h intermediate (f32)

    use_tiled = force_tiled or resident_bytes > int(0.75 * budget)

    if not use_tiled:
        # ---------- fully-resident fused call (A read from HBM exactly once) ----------
        vmem_limit = max(32 * 1024 * 1024,
                         min(budget, resident_bytes + (16 << 20)))
        kernel = functools.partial(
            _grcn_resident_kernel, depth=depth, f_out_pads=tuple(f_pads[1:]),
            nclass=nclass, compute_dtype=compute_dtype)
        n_inputs = 2 + 2 * depth
        vspec = pl.BlockSpec(memory_space=pltpu.MemorySpace.VMEM)
        out_pad = pl.pallas_call(
            kernel,
            out_shape=jax.ShapeDtypeStruct((n_pad, f_pads[-1]), jnp.float32),
            in_specs=[vspec] * n_inputs,
            out_specs=vspec,
            compiler_params=pltpu.CompilerParams(vmem_limit_bytes=vmem_limit),
            cost_estimate=_cost_estimate(n_pad, f_pads, depth, itemsize, a_reads=1),
        )(a_pad, x_pad, *w_cats, *b_combs)
        return out_pad[:n, :nclass]

    # ---------- row-tiled, pipelined call ----------
    tm = row_tile
    if tm is None:
        tm = 128
        for cand in (512, 256):
            if n_pad % cand == 0:
                tm = cand
                break
    assert n_pad % tm == 0, "row_tile must divide the padded node count"
    n_row_tiles = n_pad // tm

    n_a_buf = max(2, int(a_tile_buffers))
    tiled_bytes = (
        n_a_buf * tm * n_pad * itemsize      # A row-tile stream buffers
        + n_pad * f_pads[0] * itemsize       # X resident
        + w_bytes + b_bytes
        + 2 * tm * f_pads[-1] * 4            # output double buffer
        + n_pad * 2 * fo_max * 4             # hw scratch
        + n_pad * h_cols * 4)                # h scratch
    vmem_limit = max(32 * 1024 * 1024, min(budget, tiled_bytes + (16 << 20)))

    a_kwargs = {}
    if n_a_buf > 2:
        # deeper A pipeline for v5e/v6e (lower HBM BW); keep default 2 on v7x
        a_kwargs["pipeline_mode"] = pl.Buffered(n_a_buf)
    a_spec = pl.BlockSpec((tm, n_pad), lambda l, r: (r, 0), **a_kwargs)

    def resident_spec(shape):
        return pl.BlockSpec(shape, lambda l, r: tuple(0 for _ in shape))

    in_specs = [a_spec, resident_spec((n_pad, f_pads[0]))]
    for i in range(depth):
        in_specs.append(resident_spec((f_pads[i], 2 * f_pads[i + 1])))
    for i in range(depth):
        in_specs.append(resident_spec((1, f_pads[i + 1])))
    out_spec = pl.BlockSpec((tm, f_pads[-1]), lambda l, r: (r, 0))

    kernel = functools.partial(
        _grcn_tiled_kernel, depth=depth, f_pads=tuple(f_pads),
        nclass=nclass, tm=tm, compute_dtype=compute_dtype)

    out_pad = pl.pallas_call(
        kernel,
        out_shape=jax.ShapeDtypeStruct((n_pad, f_pads[-1]), jnp.float32),
        grid=(depth, n_row_tiles),
        in_specs=in_specs,
        out_specs=out_spec,
        scratch_shapes=[pltpu.VMEM((n_pad, 2 * fo_max), jnp.float32),
                        pltpu.VMEM((n_pad, h_cols), jnp.float32)],
        compiler_params=pltpu.CompilerParams(
            vmem_limit_bytes=vmem_limit,
            dimension_semantics=("arbitrary", "arbitrary")),
        cost_estimate=_cost_estimate(n_pad, f_pads, depth, itemsize, a_reads=depth),
    )(a_pad, x_pad, *w_cats, *b_combs)
    return out_pad[:n, :nclass]


def grcn_forward_lin(x, a_hat, params, *, compute_dtype=jnp.bfloat16,
                     force_tiled=False, row_tile=None, a_tile_buffers=2):
    """Convenience: prepare + apply in one call (prefer prepare/apply for reuse)."""
    cfg, arrays = grcn_prepare(x, a_hat, params, compute_dtype=compute_dtype)
    return grcn_apply(cfg, arrays, force_tiled=force_tiled,
                      row_tile=row_tile, a_tile_buffers=a_tile_buffers)


# ------------------------- graph normalization (plain JAX glue) -------------------------

def normalize_adjacency(edge_index, num_nodes):
    """Dense A_hat = D^-1/2 (A + I) D^-1/2 (PyG GCNConv default).

    TODO(synk): duplicate edges are deduped (.set) and the graph is
    symmetrized; PyG's gcn_norm sums duplicate edge weights, so multigraphs
    can differ slightly from the PyTorch reference.
    """
    src, dst = edge_index[0], edge_index[1]
    a = jnp.zeros((num_nodes, num_nodes), jnp.float32)
    a = a.at[src, dst].set(1.0)
    a = a.at[dst, src].set(1.0)
    a = a + jnp.eye(num_nodes, dtype=jnp.float32)
    deg = jnp.sum(a, axis=1)
    d_inv_sqrt = jnp.where(deg > 0, 1.0 / jnp.sqrt(deg), 0.0)
    return a * d_inv_sqrt[:, None] * d_inv_sqrt[None, :]


# ------------------------- pure-JAX reference -------------------------

def grcn_reference(x, a_hat, params):
    hp = jax.lax.Precision.HIGHEST
    depth = len(params["conv_w"])
    h = x
    for i in range(depth):
        conv = jnp.matmul(a_hat, jnp.matmul(h, params["conv_w"][i], precision=hp),
                          precision=hp) + params["conv_b"][i]
        res = jnp.matmul(h, params["res_w"][i], precision=hp) + params["res_b"][i]
        h = conv + res
        if i != depth - 1:
            h = jnp.maximum(h, 0.0)
    return jax.nn.log_softmax(h, axis=1)


# ------------------------- parameter setup -------------------------

def init_params(key, nfeat, nhid, nclass, depth):
    dims = [nfeat] + [nhid] * (depth - 1) + [nclass]
    conv_w, conv_b, res_w, res_b = [], [], [], []
    for i in range(depth):
        fi, fo = dims[i], dims[i + 1]
        key, k1, k2, k3, k4 = jax.random.split(key, 5)
        scale = 1.0 / jnp.sqrt(jnp.float32(fi))
        conv_w.append(jax.random.uniform(k1, (fi, fo), jnp.float32, -scale, scale))
        conv_b.append(jax.random.uniform(k2, (fo,), jnp.float32, -scale, scale))
        res_w.append(jax.random.uniform(k3, (fi, fo), jnp.float32, -scale, scale))
        res_b.append(jax.random.uniform(k4, (fo,), jnp.float32, -scale, scale))
    return {"conv_w": conv_w, "conv_b": conv_b, "res_w": res_w, "res_b": res_b}


# ------------------------- demo -------------------------

if __name__ == "__main__":
    key = jax.random.PRNGKey(0)

    # -------- case 1: small graph -> fully VMEM-resident fused path --------
    N, NFEAT, NHID, NCLASS, DEPTH = 16, 16, 32, 8, 3
    key, kx, ke = jax.random.split(key, 3)
    x = jax.random.normal(kx, (N, NFEAT), dtype=jnp.float32)
    E = 32
    edge_index = jax.random.randint(ke, (2, E), 0, N, dtype=jnp.int32)
    params = init_params(key, NFEAT, NHID, NCLASS, DEPTH)
    a_hat = normalize_adjacency(edge_index, N)
    ref = grcn_reference(x, a_hat, params)

    # prepare once (hoisted padding / casting), apply with f32 compute path
    cfg32, arrs32 = grcn_prepare(x, a_hat, params, compute_dtype=jnp.float32)
    out_f32 = jax.block_until_ready(grcn_apply(cfg32, arrs32))
    assert out_f32.shape == (N, NCLASS)
    assert jnp.allclose(out_f32, ref, atol=5e-3, rtol=5e-3), (
        "f32 resident kernel mismatch vs reference")

    # bf16 fast path (default)
    out_bf16 = jax.block_until_ready(
        grcn_forward_lin(x, a_hat, params, compute_dtype=jnp.bfloat16))
    assert out_bf16.shape == (N, NCLASS)
    assert jnp.allclose(jnp.sum(jnp.exp(out_bf16), axis=1), 1.0, atol=1e-3), (
        "log_softmax rows not normalized")
    assert jnp.allclose(out_bf16, ref, atol=0.15, rtol=0.1), (
        "bf16 resident kernel too far from reference")

    # -------- case 2: larger graph -> row-tiled pipelined path (forced) --------
    N2, NFEAT2, NHID2, NCLASS2, DEPTH2 = 300, 48, 32, 8, 3
    key, kx2, ke2, kp2 = jax.random.split(key, 4)
    x2 = jax.random.normal(kx2, (N2, NFEAT2), dtype=jnp.float32)
    E2 = 1200
    edge_index2 = jax.random.randint(ke2, (2, E2), 0, N2, dtype=jnp.int32)
    params2 = init_params(kp2, NFEAT2, NHID2, NCLASS2, DEPTH2)
    a_hat2 = normalize_adjacency(edge_index2, N2)
    ref2 = grcn_reference(x2, a_hat2, params2)

    out2_f32 = jax.block_until_ready(
        grcn_forward_lin(x2, a_hat2, params2, compute_dtype=jnp.float32,
                         force_tiled=True, row_tile=128))
    assert out2_f32.shape == (N2, NCLASS2)
    assert jnp.allclose(out2_f32, ref2, atol=1e-2, rtol=1e-2), (
        "f32 tiled kernel mismatch vs reference")

    out2_bf16 = jax.block_until_ready(
        grcn_forward_lin(x2, a_hat2, params2, compute_dtype=jnp.bfloat16,
                         force_tiled=True, row_tile=128))
    assert out2_bf16.shape == (N2, NCLASS2)
    assert jnp.allclose(jnp.sum(jnp.exp(out2_bf16), axis=1), 1.0, atol=1e-3), (
        "tiled log_softmax rows not normalized")
    # compare in probability space (log-prob deltas blow up for tiny probs)
    assert float(jnp.max(jnp.abs(jnp.exp(out2_bf16) - jnp.exp(ref2)))) < 0.08, (
        "bf16 tiled kernel probabilities too far from reference")

    print("KERNEL_OK")
</pallas_src>

<mosaic_0001>
module attributes {stable_mosaic.version = 11 : i64} {
  func.func @_grcn_resident_kernel(%arg0: memref<128x128xf32, #tpu.memory_space<vmem>>, %arg1: memref<128x128xf32, #tpu.memory_space<vmem>>, %arg2: memref<128x256xf32, #tpu.memory_space<vmem>>, %arg3: memref<128x256xf32, #tpu.memory_space<vmem>>, %arg4: memref<128x256xf32, #tpu.memory_space<vmem>>, %arg5: memref<1x128xf32, #tpu.memory_space<vmem>>, %arg6: memref<1x128xf32, #tpu.memory_space<vmem>>, %arg7: memref<1x128xf32, #tpu.memory_space<vmem>>, %arg8: memref<128x128xf32, #tpu.memory_space<vmem>>) attributes {dimension_semantics = [], scalar_prefetch = 0 : i64, scratch_operands = 0 : i64, tpu.core_type = #tpu.core_type<tc>} {
    %c0 = arith.constant 0 : index
    %c0_0 = arith.constant 0 : index
    %0 = vector.load %arg0[%c0, %c0_0] : memref<128x128xf32, #tpu.memory_space<vmem>>, vector<128x128xf32>
    %c0_1 = arith.constant 0 : index
    %c0_2 = arith.constant 0 : index
    %1 = vector.load %arg1[%c0_1, %c0_2] : memref<128x128xf32, #tpu.memory_space<vmem>>, vector<128x128xf32>
    %c0_3 = arith.constant 0 : index
    %c0_4 = arith.constant 0 : index
    %2 = vector.load %arg2[%c0_3, %c0_4] : memref<128x256xf32, #tpu.memory_space<vmem>>, vector<128x256xf32>
    %cst = arith.constant dense<0.000000e+00> : vector<128x256xf32>
    %3 = tpu.matmul %1, %2, %cst {dimension_numbers = #tpu.dot_dimension_numbers<[1], [0], [0], [1], [0, 0, 1, 1], [], []>} : vector<128x128xf32>, vector<128x256xf32>, vector<128x256xf32> -> vector<128x256xf32>
    %4 = vector.extract_strided_slice %3 {offsets = [0, 0], sizes = [128, 128], strides = [1, 1]} : vector<128x256xf32> to vector<128x128xf32>
    %5 = vector.extract_strided_slice %3 {offsets = [0, 128], sizes = [128, 128], strides = [1, 1]} : vector<128x256xf32> to vector<128x128xf32>
    %cst_5 = arith.constant dense<0.000000e+00> : vector<128x128xf32>
    %6 = tpu.matmul %0, %4, %cst_5 {dimension_numbers = #tpu.dot_dimension_numbers<[1], [0], [0], [1], [0, 0, 1, 1], [], []>} : vector<128x128xf32>, vector<128x128xf32>, vector<128x128xf32> -> vector<128x128xf32>
    %7 = arith.addf %6, %5 : vector<128x128xf32>
    %c0_6 = arith.constant 0 : index
    %c0_7 = arith.constant 0 : index
    %8 = vector.load %arg5[%c0_6, %c0_7] : memref<1x128xf32, #tpu.memory_space<vmem>>, vector<1x128xf32>
    %9 = vector.broadcast %8 : vector<1x128xf32> to vector<128x128xf32>
    %10 = arith.addf %7, %9 : vector<128x128xf32>
    %cst_8 = arith.constant 0.000000e+00 : f32
    %11 = vector.broadcast %cst_8 : f32 to vector<128x128xf32>
    %12 = arith.maximumf %10, %11 : vector<128x128xf32>
    %c0_9 = arith.constant 0 : index
    %c0_10 = arith.constant 0 : index
    %13 = vector.load %arg3[%c0_9, %c0_10] : memref<128x256xf32, #tpu.memory_space<vmem>>, vector<128x256xf32>
    %cst_11 = arith.constant dense<0.000000e+00> : vector<128x256xf32>
    %14 = tpu.matmul %12, %13, %cst_11 {dimension_numbers = #tpu.dot_dimension_numbers<[1], [0], [0], [1], [0, 0, 1, 1], [], []>} : vector<128x128xf32>, vector<128x256xf32>, vector<128x256xf32> -> vector<128x256xf32>
    %15 = vector.extract_strided_slice %14 {offsets = [0, 0], sizes = [128, 128], strides = [1, 1]} : vector<128x256xf32> to vector<128x128xf32>
    %16 = vector.extract_strided_slice %14 {offsets = [0, 128], sizes = [128, 128], strides = [1, 1]} : vector<128x256xf32> to vector<128x128xf32>
    %cst_12 = arith.constant dense<0.000000e+00> : vector<128x128xf32>
    %17 = tpu.matmul %0, %15, %cst_12 {dimension_numbers = #tpu.dot_dimension_numbers<[1], [0], [0], [1], [0, 0, 1, 1], [], []>} : vector<128x128xf32>, vector<128x128xf32>, vector<128x128xf32> -> vector<128x128xf32>
    %18 = arith.addf %17, %16 : vector<128x128xf32>
    %c0_13 = arith.constant 0 : index
    %c0_14 = arith.constant 0 : index
    %19 = vector.load %arg6[%c0_13, %c0_14] : memref<1x128xf32, #tpu.memory_space<vmem>>, vector<1x128xf32>
    %20 = vector.broadcast %19 : vector<1x128xf32> to vector<128x128xf32>
    %21 = arith.addf %18, %20 : vector<128x128xf32>
    %cst_15 = arith.constant 0.000000e+00 : f32
    %22 = vector.broadcast %cst_15 : f32 to vector<128x128xf32>
    %23 = arith.maximumf %21, %22 : vector<128x128xf32>
    %c0_16 = arith.constant 0 : index
    %c0_17 = arith.constant 0 : index
    %24 = vector.load %arg4[%c0_16, %c0_17] : memref<128x256xf32, #tpu.memory_space<vmem>>, vector<128x256xf32>
    %cst_18 = arith.constant dense<0.000000e+00> : vector<128x256xf32>
    %25 = tpu.matmul %23, %24, %cst_18 {dimension_numbers = #tpu.dot_dimension_numbers<[1], [0], [0], [1], [0, 0, 1, 1], [], []>} : vector<128x128xf32>, vector<128x256xf32>, vector<128x256xf32> -> vector<128x256xf32>
    %26 = vector.extract_strided_slice %25 {offsets = [0, 0], sizes = [128, 128], strides = [1, 1]} : vector<128x256xf32> to vector<128x128xf32>
    %27 = vector.extract_strided_slice %25 {offsets = [0, 128], sizes = [128, 128], strides = [1, 1]} : vector<128x256xf32> to vector<128x128xf32>
    %cst_19 = arith.constant dense<0.000000e+00> : vector<128x128xf32>
    %28 = tpu.matmul %0, %26, %cst_19 {dimension_numbers = #tpu.dot_dimension_numbers<[1], [0], [0], [1], [0, 0, 1, 1], [], []>} : vector<128x128xf32>, vector<128x128xf32>, vector<128x128xf32> -> vector<128x128xf32>
    %29 = arith.addf %28, %27 : vector<128x128xf32>
    %c0_20 = arith.constant 0 : index
    %c0_21 = arith.constant 0 : index
    %30 = vector.load %arg7[%c0_20, %c0_21] : memref<1x128xf32, #tpu.memory_space<vmem>>, vector<1x128xf32>
    %31 = vector.broadcast %30 : vector<1x128xf32> to vector<128x128xf32>
    %32 = arith.addf %29, %31 : vector<128x128xf32>
    %33 = tpu.iota {dimensions = array<i32: 1>} : vector<128x128xi32>
    %c8_i32 = arith.constant 8 : i32
    %34 = vector.broadcast %c8_i32 : i32 to vector<128x128xi32>
    %35 = arith.cmpi slt, %33, %34 : vector<128x128xi32>
    %cst_22 = arith.constant -1.000000e+30 : f32
    %36 = vector.broadcast %cst_22 : f32 to vector<128x128xf32>
    %37 = arith.select %35, %32, %36 : vector<128x128xi1>, vector<128x128xf32>
    %cst_23 = arith.constant dense<0xFF800000> : vector<128xf32>
    %38 = vector.multi_reduction <maximumf>, %37, %cst_23 [1] : vector<128x128xf32> to vector<128xf32>
    %39 = vector.shape_cast %38 : vector<128xf32> to vector<128x1xf32>
    %40 = vector.broadcast %39 : vector<128x1xf32> to vector<128x128xf32>
    %41 = arith.subf %37, %40 : vector<128x128xf32>
    %42 = math.exp %41 : vector<128x128xf32>
    %cst_24 = arith.constant dense<0.000000e+00> : vector<128xf32>
    %43 = vector.multi_reduction <add>, %42, %cst_24 [1] : vector<128x128xf32> to vector<128xf32>
    %44 = vector.shape_cast %43 : vector<128xf32> to vector<128x1xf32>
    %45 = math.log %44 : vector<128x1xf32>
    %46 = vector.broadcast %45 : vector<128x1xf32> to vector<128x128xf32>
    %47 = arith.subf %41, %46 : vector<128x128xf32>
    %c0_25 = arith.constant 0 : index
    %c0_26 = arith.constant 0 : index
    %48 = vector.load %arg8[%c0_25, %c0_26] : memref<128x128xf32, #tpu.memory_space<vmem>>, vector<128x128xf32>
    tpu.vector_store %arg8[%c0_25, %c0_26], %47 {strides = array<i32>} : memref<128x128xf32, #tpu.memory_space<vmem>>, vector<128x128xf32>,
    return
  }
}

</mosaic_0001>

<llo_original>
// kernel: tpu_custom_call.1
$region0: #{tpu_custom_call.1}
  #allocation0 [shape = 'u32[]', space=smem, size = 0x4, offset = 0x4, fixed_abs, tag = 'smem constant byte address 0x4 - core index']
  #allocation1 [shape = 'u32[144,128]{1,0:T(1,128)}', space=vmem, size = 0x12000, scoped, tag = 'internal scratch']
  %s0 = inlined_call_operand.hbm [shape: f32[128,128], index: 0, kind: input, shape index: {}]
  %s1 = inlined_call_operand.hbm [shape: f32[128,128], index: 1, kind: input, shape index: {}]
  %s2 = inlined_call_operand.hbm [shape: f32[128,256], index: 2, kind: input, shape index: {}]
  %s3 = inlined_call_operand.hbm [shape: f32[128,256], index: 3, kind: input, shape index: {}]
  %s4 = inlined_call_operand.hbm [shape: f32[128,256], index: 4, kind: input, shape index: {}]
  %s5 = inlined_call_operand.vmem [shape: f32[1,128], index: 5, kind: input, shape index: {}]
  %s6 = inlined_call_operand.vmem [shape: f32[1,128], index: 6, kind: input, shape index: {}]
  %s7 = inlined_call_operand.vmem [shape: f32[1,128], index: 7, kind: input, shape index: {}]
  %s8 = inlined_call_operand.hbm [shape: f32[128,128], index: 8, kind: output, shape index: {}]
  %s9 = sld [smem:[#allocation0]]
  $region62: #{tpu_custom_call.1} parent=0
    _
  %s11 = ssub.s32 1, %s9
  %s12 = scalar_select 0, %s11, %s9
  $region1: #{tpu_custom_call.1} parent=0
    #allocation2 [shape = 'u8[65536]{0}', space=vmem, size = 0x10000, scoped, tag = 'input window, operand 0, single buffered']
    #allocation3 [shape = 's32[1]{0}', space=sflag, size = 0x4, scoped, tag = 'scoped memory for tpu_custom_call.1']
    #allocation4 [shape = 's32[1]{0}', space=sflag, size = 0x4, scoped, tag = 'scoped memory for tpu_custom_call.1']
    #allocation5 [shape = 'u8[65536]{0}', space=vmem, size = 0x10000, scoped, tag = 'input window, operand 1, single buffered']
    #allocation6 [shape = 's32[1]{0}', space=sflag, size = 0x4, scoped, tag = 'scoped memory for tpu_custom_call.1']
    #allocation7 [shape = 'u8[131072]{0}', space=vmem, size = 0x20000, scoped, tag = 'input window, operand 2, single buffered']
    #allocation8 [shape = 'u8[131072]{0}', space=vmem, size = 0x20000, scoped, tag = 'input window, operand 3, single buffered']
    #allocation9 [shape = 's32[1]{0}', space=sflag, size = 0x4, scoped, tag = 'scoped memory for tpu_custom_call.1']
    #allocation10 [shape = 'u8[131072]{0}', space=vmem, size = 0x20000, scoped, tag = 'input window, operand 4, single buffered']
    #allocation11 [shape = 'u8[65536]{0}', space=vmem, size = 0x10000, scoped, tag = 'output window, operand 0, single buffered']
    %13 = vsyncpa [#allocation3], 0
    %14 = vsyncpa [#allocation6], 0
    %15 = vsyncpa [#allocation9], 0
    %16 = vsyncpa [#allocation4], 0
    // Predicated region
    $region2: #{tpu_custom_call.1} parent=1 // pred_check
      _
    $region3: #{tpu_custom_call.1} parent=1 // pred_check_branch
      %18 = sbr.rel (0) target = $region5
    $region4: #{tpu_custom_call.1} parent=1 // pred_region
      %s20 = ssub.s32 2048, 2048
      %21 = vsyncadd [#allocation3], %s20
      %s22 = sshll.u32 [#allocation2], 4
      %s23 = int_to_ptr.vmem [resolvable:$true] %s22
      %28 = dma.hbm_to_vmem [thread:$0]  %s0, 2048, %s23, [#allocation3], 128, 128, 8
    $region5: #{tpu_custom_call.1} parent=1 // pred_fallthru
      _
    // Predicated region
    $region6: #{tpu_custom_call.1} parent=1 // pred_check
      _
    $region7: #{tpu_custom_call.1} parent=1 // pred_check_branch
      %30 = sbr.rel (0) target = $region9
    $region8: #{tpu_custom_call.1} parent=1 // pred_region
      %s32 = ssub.s32 2048, 2048
      %33 = vsyncadd [#allocation6], %s32
      %s34 = sshll.u32 [#allocation5], 4
      %s35 = int_to_ptr.vmem [resolvable:$true] %s34
      %40 = dma.hbm_to_vmem [thread:$0]  %s1, 2048, %s35, [#allocation6], 128, 128, 8
    $region9: #{tpu_custom_call.1} parent=1 // pred_fallthru
      _
    // Predicated region
    $region10: #{tpu_custom_call.1} parent=1 // pred_check
      _
    $region11: #{tpu_custom_call.1} parent=1 // pred_check_branch
      %42 = sbr.rel (0) target = $region13
    $region12: #{tpu_custom_call.1} parent=1 // pred_region
      %s44 = ssub.s32 4096, 4096
      %45 = vsyncadd [#allocation6], %s44
      %s46 = sshll.u32 [#allocation7], 4
      %s47 = int_to_ptr.vmem [resolvable:$true] %s46
      %52 = dma.hbm_to_vmem [thread:$0]  %s2, 4096, %s47, [#allocation6], 256, 256, 16
    $region13: #{tpu_custom_call.1} parent=1 // pred_fallthru
      _
    // Predicated region
    $region14: #{tpu_custom_call.1} parent=1 // pred_check
      _
    $region15: #{tpu_custom_call.1} parent=1 // pred_check_branch
      %54 = sbr.rel (0) target = $region17
    $region16: #{tpu_custom_call.1} parent=1 // pred_region
      %s56 = ssub.s32 4096, 4096
      %57 = vsyncadd [#allocation9], %s56
      %s58 = sshll.u32 [#allocation8], 4
      %s59 = int_to_ptr.vmem [resolvable:$true] %s58
      %64 = dma.hbm_to_vmem [thread:$0]  %s3, 4096, %s59, [#allocation9], 256, 256, 16
    $region17: #{tpu_custom_call.1} parent=1 // pred_fallthru
      _
    // Predicated region
    $region18: #{tpu_custom_call.1} parent=1 // pred_check
      _
    $region19: #{tpu_custom_call.1} parent=1 // pred_check_branch
      %66 = sbr.rel (0) target = $region21
    $region20: #{tpu_custom_call.1} parent=1 // pred_region
      %s68 = ssub.s32 4096, 4096
      %69 = vsyncadd [#allocation9], %s68
      %s70 = sshll.u32 [#allocation10], 4
      %s71 = int_to_ptr.vmem [resolvable:$true] %s70
      %76 = dma.hbm_to_vmem [thread:$0]  %s4, 4096, %s71, [#allocation9], 256, 256, 16
    $region21: #{tpu_custom_call.1} parent=1 // pred_fallthru
      _
    // Predicated region
    $region22: #{tpu_custom_call.1} parent=1 // pred_check
      _
    $region23: #{tpu_custom_call.1} parent=1 // pred_check_branch
      %78 = sbr.rel (0) target = $region25
    $region24: #{tpu_custom_call.1} parent=1 // pred_region
      _
    $region25: #{tpu_custom_call.1} parent=1 // pred_fallthru
      _
    // Predicated region
    $region26: #{tpu_custom_call.1} parent=1 // pred_check
      _
    $region27: #{tpu_custom_call.1} parent=1 // pred_check_branch
      %80 = sbr.rel (0) target = $region29
    $region28: #{tpu_custom_call.1} parent=1 // pred_region
      _
    $region29: #{tpu_custom_call.1} parent=1 // pred_fallthru
      _
    // Predicated region
    $region30: #{tpu_custom_call.1} parent=1 // pred_check
      _
    $region31: #{tpu_custom_call.1} parent=1 // pred_check_branch
      %82 = sbr.rel (0) target = $region33
    $region32: #{tpu_custom_call.1} parent=1 // pred_region
      _
    $region33: #{tpu_custom_call.1} parent=1 // pred_fallthru
      _
    // Predicated region
    $region34: #{tpu_custom_call.1} parent=1 // pred_check
      _
    $region35: #{tpu_custom_call.1} parent=1 // pred_check_branch
      %84 = sbr.rel (0) target = $region37
    $region36: #{tpu_custom_call.1} parent=1 // pred_region
      %85 = dma.done [#allocation3], 2048
    $region37: #{tpu_custom_call.1} parent=1 // pred_fallthru
      _
    // Predicated region
    $region38: #{tpu_custom_call.1} parent=1 // pred_check
      _
    $region39: #{tpu_custom_call.1} parent=1 // pred_check_branch
      %87 = sbr.rel (0) target = $region41
    $region40: #{tpu_custom_call.1} parent=1 // pred_region
      %88 = dma.done [#allocation6], 2048
    $region41: #{tpu_custom_call.1} parent=1 // pred_fallthru
      _
    // Predicated region
    $region42: #{tpu_custom_call.1} parent=1 // pred_check
      _
    $region43: #{tpu_custom_call.1} parent=1 // pred_check_branch
      %90 = sbr.rel (0) target = $region45
    $region44: #{tpu_custom_call.1} parent=1 // pred_region
      %91 = dma.done [#allocation6], 4096
    $region45: #{tpu_custom_call.1} parent=1 // pred_fallthru
      _
    // Predicated region
    $region46: #{tpu_custom_call.1} parent=1 // pred_check
      _
    $region47: #{tpu_custom_call.1} parent=1 // pred_check_branch
      %93 = sbr.rel (0) target = $region49
    $region48: #{tpu_custom_call.1} parent=1 // pred_region
      %94 = dma.done [#allocation9], 4096
    $region49: #{tpu_custom_call.1} parent=1 // pred_fallthru
      _
    // Predicated region
    $region50: #{tpu_custom_call.1} parent=1 // pred_check
      _
    $region51: #{tpu_custom_call.1} parent=1 // pred_check_branch
      %96 = sbr.rel (0) target = $region53
    $region52: #{tpu_custom_call.1} parent=1 // pred_region
      %97 = dma.done [#allocation9], 4096
    $region53: #{tpu_custom_call.1} parent=1 // pred_fallthru
      _
    %v98 = vld [vmem:[#allocation2] sm:$0xff]
    %v99 = vld [vmem:[#allocation2 + $0x8] sm:$0xff]
    %v100 = vld [vmem:[#allocation2 + $0x10] sm:$0xff]
    %v101 = vld [vmem:[#allocation2 + $0x18] sm:$0xff]
    %v102 = vld [vmem:[#allocation2 + $0x20] sm:$0xff]
    %v103 = vld [vmem:[#allocation2 + $0x28] sm:$0xff]
    %v104 = vld [vmem:[#allocation2 + $0x30] sm:$0xff]
    %v105 = vld [vmem:[#allocation2 + $0x38] sm:$0xff]
    %v106 = vld [vmem:[#allocation2 + $0x40] sm:$0xff]
    %v107 = vld [vmem:[#allocation2 + $0x48] sm:$0xff]
    %v108 = vld [vmem:[#allocation2 + $0x50] sm:$0xff]
    %v109 = vld [vmem:[#allocation2 + $0x58] sm:$0xff]
    %v110 = vld [vmem:[#allocation2 + $0x60] sm:$0xff]
    %v111 = vld [vmem:[#allocation2 + $0x68] sm:$0xff]
    %v112 = vld [vmem:[#allocation2 + $0x70] sm:$0xff]
    %v113 = vld [vmem:[#allocation2 + $0x78] sm:$0xff]
    %v114 = vld [vmem:[#allocation5] sm:$0xff]
    %v115 = vld [vmem:[#allocation5 + $0x8] sm:$0xff]
    %v116 = vld [vmem:[#allocation5 + $0x10] sm:$0xff]
    %v117 = vld [vmem:[#allocation5 + $0x18] sm:$0xff]
    %v118 = vld [vmem:[#allocation5 + $0x20] sm:$0xff]
    %v119 = vld [vmem:[#allocation5 + $0x28] sm:$0xff]
    %v120 = vld [vmem:[#allocation5 + $0x30] sm:$0xff]
    %v121 = vld [vmem:[#allocation5 + $0x38] sm:$0xff]
    %v122 = vld [vmem:[#allocation5 + $0x40] sm:$0xff]
    %v123 = vld [vmem:[#allocation5 + $0x48] sm:$0xff]
    %v124 = vld [vmem:[#allocation5 + $0x50] sm:$0xff]
    %v125 = vld [vmem:[#allocation5 + $0x58] sm:$0xff]
    %v126 = vld [vmem:[#allocation5 + $0x60] sm:$0xff]
    %v127 = vld [vmem:[#allocation5 + $0x68] sm:$0xff]
    %v128 = vld [vmem:[#allocation5 + $0x70] sm:$0xff]
    %v129 = vld [vmem:[#allocation5 + $0x78] sm:$0xff]
    %v130 = vld [vmem:[#allocation7] sm:$0xff]
    %v131 = vld [vmem:[#allocation7 + $0x8] sm:$0xff]
    %v132 = vld [vmem:[#allocation7 + $0x10] sm:$0xff]
    %v133 = vld [vmem:[#allocation7 + $0x18] sm:$0xff]
    %v134 = vld [vmem:[#allocation7 + $0x20] sm:$0xff]
    %v135 = vld [vmem:[#allocation7 + $0x28] sm:$0xff]
    %v136 = vld [vmem:[#allocation7 + $0x30] sm:$0xff]
    %v137 = vld [vmem:[#allocation7 + $0x38] sm:$0xff]
    %v138 = vld [vmem:[#allocation7 + $0x40] sm:$0xff]
    %v139 = vld [vmem:[#allocation7 + $0x48] sm:$0xff]
    %v140 = vld [vmem:[#allocation7 + $0x50] sm:$0xff]
    %v141 = vld [vmem:[#allocation7 + $0x58] sm:$0xff]
    %v142 = vld [vmem:[#allocation7 + $0x60] sm:$0xff]
    %v143 = vld [vmem:[#allocation7 + $0x68] sm:$0xff]
    %v144 = vld [vmem:[#allocation7 + $0x70] sm:$0xff]
    %v145 = vld [vmem:[#allocation7 + $0x78] sm:$0xff]
    %v146 = vld [vmem:[#allocation7 + $0x80] sm:$0xff]
    %v147 = vld [vmem:[#allocation7 + $0x88] sm:$0xff]
    %v148 = vld [vmem:[#allocation7 + $0x90] sm:$0xff]
    %v149 = vld [vmem:[#allocation7 + $0x98] sm:$0xff]
    %v150 = vld [vmem:[#allocation7 + $0xa0] sm:$0xff]
    %v151 = vld [vmem:[#allocation7 + $0xa8] sm:$0xff]
    %v152 = vld [vmem:[#allocation7 + $0xb0] sm:$0xff]
    %v153 = vld [vmem:[#allocation7 + $0xb8] sm:$0xff]
    %v154 = vld [vmem:[#allocation7 + $0xc0] sm:$0xff]
    %v155 = vld [vmem:[#allocation7 + $0xc8] sm:$0xff]
    %v156 = vld [vmem:[#allocation7 + $0xd0] sm:$0xff]
    %v157 = vld [vmem:[#allocation7 + $0xd8] sm:$0xff]
    %v158 = vld [vmem:[#allocation7 + $0xe0] sm:$0xff]
    %v159 = vld [vmem:[#allocation7 + $0xe8] sm:$0xff]
    %v160 = vld [vmem:[#allocation7 + $0xf0] sm:$0xff]
    %v161 = vld [vmem:[#allocation7 + $0xf8] sm:$0xff]
    %162 = vmatprep.subr.mxu0 %v131
    %163 = vmatpush1.msra.mxu0 %v130
    %164 = vmatprep.subr.mxu0 %v133
    %165 = vmatpush1.msra.mxu0 %v132
    %166 = vmatprep.subr.mxu0 %v135
    %167 = vmatpush1.msra.mxu0 %v134
    %168 = vmatprep.subr.mxu0 %v137
    %169 = vmatpush1.msra.mxu0 %v136
    %170 = vmatprep.subr.mxu0 %v139
    %171 = vmatpush1.msra.mxu0 %v138
    %172 = vmatprep.subr.mxu0 %v141
    %173 = vmatpush1.msra.mxu0 %v140
    %174 = vmatprep.subr.mxu0 %v143
    %175 = vmatpush1.msra.mxu0 %v142
    %176 = vmatprep.subr.mxu0 %v145
    %177 = vmatpush1.msra.mxu0 %v144
    %178 = vmatprep.subr.mxu0 %v147
    %179 = vmatpush1.msra.mxu0 %v146
    %180 = vmatprep.subr.mxu0 %v149
    %181 = vmatpush1.msra.mxu0 %v148
    %182 = vmatprep.subr.mxu0 %v151
    %183 = vmatpush1.msra.mxu0 %v150
    %184 = vmatprep.subr.mxu0 %v153
    %185 = vmatpush1.msra.mxu0 %v152
    %186 = vmatprep.subr.mxu0 %v155
    %187 = vmatpush1.msra.mxu0 %v154
    %188 = vmatprep.subr.mxu0 %v157
    %189 = vmatpush1.msra.mxu0 %v156
    %190 = vmatprep.subr.mxu0 %v159
    %191 = vmatpush1.msra.mxu0 %v158
    %192 = vmatprep.subr.mxu0 %v161
    %193 = vmatpush1.msra.mxu0 %v160
    %194 = vmatprep.subr.mxu0 0.0
    %195 = vmatpush1.msra.mxu0 0.0
    %196 = vmatprep.subr.mxu0 0.0
    %197 = vmatpush1.msra.mxu0 0.0
    %198 = vmatprep.subr.mxu0 0.0
    %199 = vmatpush1.msra.mxu0 0.0
    %200 = vmatprep.subr.mxu0 0.0
    %201 = vmatpush1.msra.mxu0 0.0
    %202 = vmatprep.subr.mxu0 0.0
    %203 = vmatpush1.msra.mxu0 0.0
    %204 = vmatprep.subr.mxu0 0.0
    %205 = vmatpush1.msra.mxu0 0.0
    %206 = vmatprep.subr.mxu0 0.0
    %207 = vmatpush1.msra.mxu0 0.0
    %208 = vmatprep.subr.mxu0 0.0
    %209 = vmatpush1.msra.mxu0 0.0
    %210 = vmatprep.subr.mxu0 0.0
    %211 = vmatpush1.msra.mxu0 0.0
    %212 = vmatprep.subr.mxu0 0.0
    %213 = vmatpush1.msra.mxu0 0.0
    %214 = vmatprep.subr.mxu0 0.0
    %215 = vmatpush1.msra.mxu0 0.0
    %216 = vmatprep.subr.mxu0 0.0
    %217 = vmatpush1.msra.mxu0 0.0
    %218 = vmatprep.subr.mxu0 0.0
    %219 = vmatpush1.msra.mxu0 0.0
    %220 = vmatprep.subr.mxu0 0.0
    %221 = vmatpush1.msra.mxu0 0.0
    %222 = vmatprep.subr.mxu0 0.0
    %223 = vmatpush1.msra.mxu0 0.0
    %224 = vmatprep.subr.mxu0 0.0
    %225 = vmatpush1.msra.mxu0 0.0
    %226 = vmatprep.mubr.f32.mxu0 0.0
    %227 = vmatmul.mubr.f32.gmra.mrb[0].mxu0 %v114
    %v228 = vpop.f32.mrb[0].mxu0
    %v229 = vadd.f32 0.0, %v228
    %v230 = vpop.f32.mrb[0].mxu0
    %v231 = vadd.f32 0.0, %v230
    %232 = vmatprep.mubr.f32.mxu0 0.0
    %233 = vmatmul.mubr.f32.gmra.mrb[0].mxu0 %v115
    %v234 = vpop.f32.mrb[0].mxu0
    %v235 = vadd.f32 0.0, %v234
    %v236 = vpop.f32.mrb[0].mxu0
    %v237 = vadd.f32 0.0, %v236
    %238 = vmatprep.mubr.f32.mxu0 0.0
    %239 = vmatmul.mubr.f32.gmra.mrb[0].mxu0 %v116
    %v240 = vpop.f32.mrb[0].mxu0
    %v241 = vadd.f32 0.0, %v240
    %v242 = vpop.f32.mrb[0].mxu0
    %v243 = vadd.f32 0.0, %v242
    %244 = vmatprep.mubr.f32.mxu0 0.0
    %245 = vmatmul.mubr.f32.gmra.mrb[0].mxu0 %v117
    %v246 = vpop.f32.mrb[0].mxu0
    %v247 = vadd.f32 0.0, %v246
    %v248 = vpop.f32.mrb[0].mxu0
    %v249 = vadd.f32 0.0, %v248
    %250 = vmatprep.mubr.f32.mxu0 0.0
    %251 = vmatmul.mubr.f32.gmra.mrb[0].mxu0 %v118
    %v252 = vpop.f32.mrb[0].mxu0
    %v253 = vadd.f32 0.0, %v252
    %v254 = vpop.f32.mrb[0].mxu0
    %v255 = vadd.f32 0.0, %v254
    %256 = vmatprep.mubr.f32.mxu0 0.0
    %257 = vmatmul.mubr.f32.gmra.mrb[0].mxu0 %v119
    %v258 = vpop.f32.mrb[0].mxu0
    %v259 = vadd.f32 0.0, %v258
    %v260 = vpop.f32.mrb[0].mxu0
    %v261 = vadd.f32 0.0, %v260
    %262 = vmatprep.mubr.f32.mxu0 0.0
    %263 = vmatmul.mubr.f32.gmra.mrb[0].mxu0 %v120
    %v264 = vpop.f32.mrb[0].mxu0
    %v265 = vadd.f32 0.0, %v264
    %v266 = vpop.f32.mrb[0].mxu0
    %v267 = vadd.f32 0.0, %v266
    %268 = vmatprep.mubr.f32.mxu0 0.0
    %269 = vmatmul.mubr.f32.gmra.mrb[0].mxu0 %v121
    %v270 = vpop.f32.mrb[0].mxu0
    %v271 = vadd.f32 0.0, %v270
    %v272 = vpop.f32.mrb[0].mxu0
    %v273 = vadd.f32 0.0, %v272
    %274 = vmatprep.mubr.f32.mxu0 0.0
    %275 = vmatmul.mubr.f32.gmra.mrb[0].mxu0 %v122
    %v276 = vpop.f32.mrb[0].mxu0
    %v277 = vadd.f32 0.0, %v276
    %v278 = vpop.f32.mrb[0].mxu0
    %v279 = vadd.f32 0.0, %v278
    %280 = vmatprep.mubr.f32.mxu0 0.0
    %281 = vmatmul.mubr.f32.gmra.mrb[0].mxu0 %v123
    %v282 = vpop.f32.mrb[0].mxu0
    %v283 = vadd.f32 0.0, %v282
    %v284 = vpop.f32.mrb[0].mxu0
    %v285 = vadd.f32 0.0, %v284
    %286 = vmatprep.mubr.f32.mxu0 0.0
    %287 = vmatmul.mubr.f32.gmra.mrb[0].mxu0 %v124
    %v288 = vpop.f32.mrb[0].mxu0
    %v289 = vadd.f32 0.0, %v288
    %v290 = vpop.f32.mrb[0].mxu0
    %v291 = vadd.f32 0.0, %v290
    %292 = vmatprep.mubr.f32.mxu0 0.0
    %293 = vmatmul.mubr.f32.gmra.mrb[0].mxu0 %v125
    %v294 = vpop.f32.mrb[0].mxu0
    %v295 = vadd.f32 0.0, %v294
    %v296 = vpop.f32.mrb[0].mxu0
    %v297 = vadd.f32 0.0, %v296
    %298 = vmatprep.mubr.f32.mxu0 0.0
    %299 = vmatmul.mubr.f32.gmra.mrb[0].mxu0 %v126
    %v300 = vpop.f32.mrb[0].mxu0
    %v301 = vadd.f32 0.0, %v300
    %v302 = vpop.f32.mrb[0].mxu0
    %v303 = vadd.f32 0.0, %v302
    %304 = vmatprep.mubr.f32.mxu0 0.0
    %305 = vmatmul.mubr.f32.gmra.mrb[0].mxu0 %v127
    %v306 = vpop.f32.mrb[0].mxu0
    %v307 = vadd.f32 0.0, %v306
    %v308 = vpop.f32.mrb[0].mxu0
    %v309 = vadd.f32 0.0, %v308
    %310 = vmatprep.mubr.f32.mxu0 0.0
    %311 = vmatmul.mubr.f32.gmra.mrb[0].mxu0 %v128
    %v312 = vpop.f32.mrb[0].mxu0
    %v313 = vadd.f32 0.0, %v312
    %v314 = vpop.f32.mrb[0].mxu0
    %v315 = vadd.f32 0.0, %v314
    %316 = vmatprep.mubr.f32.mxu0 0.0
    %317 = vmatmul.mubr.f32.gmra.mrb[0].mxu0 %v129
    %v318 = vpop.f32.mrb[0].mxu0
    %v319 = vadd.f32 0.0, %v318
    %v320 = vpop.f32.mrb[0].mxu0
    %v321 = vadd.f32 0.0, %v320
    %322 = vdwg.mxu0
    %323 = vmatprep.subr.mxu0 0.0
    %324 = vmatpush1.msra.mxu0 %v229
    %325 = vmatprep.subr.mxu0 0.0
    %326 = vmatpush1.msra.mxu0 %v235
    %327 = vmatprep.subr.mxu0 0.0
    %328 = vmatpush1.msra.mxu0 %v241
    %329 = vmatprep.subr.mxu0 0.0
    %330 = vmatpush1.msra.mxu0 %v247
    %331 = vmatprep.subr.mxu0 0.0
    %332 = vmatpush1.msra.mxu0 %v253
    %333 = vmatprep.subr.mxu0 0.0
    %334 = vmatpush1.msra.mxu0 %v259
    %335 = vmatprep.subr.mxu0 0.0
    %336 = vmatpush1.msra.mxu0 %v265
    %337 = vmatprep.subr.mxu0 0.0
    %338 = vmatpush1.msra.mxu0 %v271
    %339 = vmatprep.subr.mxu0 0.0
    %340 = vmatpush1.msra.mxu0 %v277
    %341 = vmatprep.subr.mxu0 0.0
    %342 = vmatpush1.msra.mxu0 %v283
    %343 = vmatprep.subr.mxu0 0.0
    %344 = vmatpush1.msra.mxu0 %v289
    %345 = vmatprep.subr.mxu0 0.0
    %346 = vmatpush1.msra.mxu0 %v295
    %347 = vmatprep.subr.mxu0 0.0
    %348 = vmatpush1.msra.mxu0 %v301
    %349 = vmatprep.subr.mxu0 0.0
    %350 = vmatpush1.msra.mxu0 %v307
    %351 = vmatprep.subr.mxu0 0.0
    %352 = vmatpush1.msra.mxu0 %v313
    %353 = vmatprep.subr.mxu0 0.0
    %354 = vmatpush1.msra.mxu0 %v319
    %355 = vmatprep.subr.mxu0 0.0
    %356 = vmatpush1.msra.mxu0 0.0
    %357 = vmatprep.subr.mxu0 0.0
    %358 = vmatpush1.msra.mxu0 0.0
    %359 = vmatprep.subr.mxu0 0.0
    %360 = vmatpush1.msra.mxu0 0.0
    %361 = vmatprep.subr.mxu0 0.0
    %362 = vmatpush1.msra.mxu0 0.0
    %363 = vmatprep.subr.mxu0 0.0
    %364 = vmatpush1.msra.mxu0 0.0
    %365 = vmatprep.subr.mxu0 0.0
    %366 = vmatpush1.msra.mxu0 0.0
    %367 = vmatprep.subr.mxu0 0.0
    %368 = vmatpush1.msra.mxu0 0.0
    %369 = vmatprep.subr.mxu0 0.0
    %370 = vmatpush1.msra.mxu0 0.0
    %371 = vmatprep.subr.mxu0 0.0
    %372 = vmatpush1.msra.mxu0 0.0
    %373 = vmatprep.subr.mxu0 0.0
    %374 = vmatpush1.msra.mxu0 0.0
    %375 = vmatprep.subr.mxu0 0.0
    %376 = vmatpush1.msra.mxu0 0.0
    %377 = vmatprep.subr.mxu0 0.0
    %378 = vmatpush1.msra.mxu0 0.0
    %379 = vmatprep.subr.mxu0 0.0
    %380 = vmatpush1.msra.mxu0 0.0
    %381 = vmatprep.subr.mxu0 0.0
    %382 = vmatpush1.msra.mxu0 0.0
    %383 = vmatprep.subr.mxu0 0.0
    %384 = vmatpush1.msra.mxu0 0.0
    %385 = vmatprep.subr.mxu0 0.0
    %386 = vmatpush1.msra.mxu0 0.0
    %387 = vmatprep.mubr.f32.mxu0 0.0
    %388 = vmatmul.mubr.f32.gmra.mrb[0].mxu0 %v98
    %v389 = vpop.f32.mrb[0].mxu0
    %v390 = vadd.f32 %v231, %v389
    %v391 = vpop.f32.mrb[0].mxu0
    %392 = vmatprep.mubr.f32.mxu0 0.0
    %393 = vmatmul.mubr.f32.gmra.mrb[0].mxu0 %v99
    %v394 = vpop.f32.mrb[0].mxu0
    %v395 = vadd.f32 %v237, %v394
    %v396 = vpop.f32.mrb[0].mxu0
    %397 = vmatprep.mubr.f32.mxu0 0.0
    %398 = vmatmul.mubr.f32.gmra.mrb[0].mxu0 %v100
    %v399 = vpop.f32.mrb[0].mxu0
    %v400 = vadd.f32 %v243, %v399
    %v401 = vpop.f32.mrb[0].mxu0
    %402 = vmatprep.mubr.f32.mxu0 0.0
    %403 = vmatmul.mubr.f32.gmra.mrb[0].mxu0 %v101
    %v404 = vpop.f32.mrb[0].mxu0
    %v405 = vadd.f32 %v249, %v404
    %v406 = vpop.f32.mrb[0].mxu0
    %407 = vmatprep.mubr.f32.mxu0 0.0
    %408 = vmatmul.mubr.f32.gmra.mrb[0].mxu0 %v102
    %v409 = vpop.f32.mrb[0].mxu0
    %v410 = vadd.f32 %v255, %v409
    %v411 = vpop.f32.mrb[0].mxu0
    %412 = vmatprep.mubr.f32.mxu0 0.0
    %413 = vmatmul.mubr.f32.gmra.mrb[0].mxu0 %v103
    %v414 = vpop.f32.mrb[0].mxu0
    %v415 = vadd.f32 %v261, %v414
    %v416 = vpop.f32.mrb[0].mxu0
    %417 = vmatprep.mubr.f32.mxu0 0.0
    %418 = vmatmul.mubr.f32.gmra.mrb[0].mxu0 %v104
    %v419 = vpop.f32.mrb[0].mxu0
    %v420 = vadd.f32 %v267, %v419
    %v421 = vpop.f32.mrb[0].mxu0
    %422 = vmatprep.mubr.f32.mxu0 0.0
    %423 = vmatmul.mubr.f32.gmra.mrb[0].mxu0 %v105
    %v424 = vpop.f32.mrb[0].mxu0
    %v425 = vadd.f32 %v273, %v424
    %v426 = vpop.f32.mrb[0].mxu0
    %427 = vmatprep.mubr.f32.mxu0 0.0
    %428 = vmatmul.mubr.f32.gmra.mrb[0].mxu0 %v106
    %v429 = vpop.f32.mrb[0].mxu0
    %v430 = vadd.f32 %v279, %v429
    %v431 = vpop.f32.mrb[0].mxu0
    %432 = vmatprep.mubr.f32.mxu0 0.0
    %433 = vmatmul.mubr.f32.gmra.mrb[0].mxu0 %v107
    %v434 = vpop.f32.mrb[0].mxu0
    %v435 = vadd.f32 %v285, %v434
    %v436 = vpop.f32.mrb[0].mxu0
    %437 = vmatprep.mubr.f32.mxu0 0.0
    %438 = vmatmul.mubr.f32.gmra.mrb[0].mxu0 %v108
    %v439 = vpop.f32.mrb[0].mxu0
    %v440 = vadd.f32 %v291, %v439
    %v441 = vpop.f32.mrb[0].mxu0
    %442 = vmatprep.mubr.f32.mxu0 0.0
    %443 = vmatmul.mubr.f32.gmra.mrb[0].mxu0 %v109
    %v444 = vpop.f32.mrb[0].mxu0
    %v445 = vadd.f32 %v297, %v444
    %v446 = vpop.f32.mrb[0].mxu0
    %447 = vmatprep.mubr.f32.mxu0 0.0
    %448 = vmatmul.mubr.f32.gmra.mrb[0].mxu0 %v110
    %v449 = vpop.f32.mrb[0].mxu0
    %v450 = vadd.f32 %v303, %v449
    %v451 = vpop.f32.mrb[0].mxu0
    %452 = vmatprep.mubr.f32.mxu0 0.0
    %453 = vmatmul.mubr.f32.gmra.mrb[0].mxu0 %v111
    %v454 = vpop.f32.mrb[0].mxu0
    %v455 = vadd.f32 %v309, %v454
    %v456 = vpop.f32.mrb[0].mxu0
    %457 = vmatprep.mubr.f32.mxu0 0.0
    %458 = vmatmul.mubr.f32.gmra.mrb[0].mxu0 %v112
    %v459 = vpop.f32.mrb[0].mxu0
    %v460 = vadd.f32 %v315, %v459
    %v461 = vpop.f32.mrb[0].mxu0
    %462 = vmatprep.mubr.f32.mxu0 0.0
    %463 = vmatmul.mubr.f32.gmra.mrb[0].mxu0 %v113
    %v464 = vpop.f32.mrb[0].mxu0
    %v465 = vadd.f32 %v321, %v464
    %v466 = vpop.f32.mrb[0].mxu0
    %467 = vdwg.mxu0
    %v468 = vld [vmem:[%s5] sm:$0x1]
    %v470 = vlaneseq
    %v471 = vshrl.u32 %v470, 7
    %v472 = vsub.s32 0, %v471
    %v473 = vrot.slane %v468, %v472
    %v475 = vadd.f32 %v390, %v473
    %v476 = vadd.f32 %v395, %v473
    %v477 = vadd.f32 %v400, %v473
    %v478 = vadd.f32 %v405, %v473
    %v479 = vadd.f32 %v410, %v473
    %v480 = vadd.f32 %v415, %v473
    %v481 = vadd.f32 %v420, %v473
    %v482 = vadd.f32 %v425, %v473
    %v483 = vadd.f32 %v430, %v473
    %v484 = vadd.f32 %v435, %v473
    %v485 = vadd.f32 %v440, %v473
    %v486 = vadd.f32 %v445, %v473
    %v487 = vadd.f32 %v450, %v473
    %v488 = vadd.f32 %v455, %v473
    %v489 = vadd.f32 %v460, %v473
    %v490 = vadd.f32 %v465, %v473
    %v491 = vmax.f32 %v475, 0.0
    %v492 = vmax.f32 %v476, 0.0
    %v493 = vmax.f32 %v477, 0.0
    %v494 = vmax.f32 %v478, 0.0
    %v495 = vmax.f32 %v479, 0.0
    %v496 = vmax.f32 %v480, 0.0
    %v497 = vmax.f32 %v481, 0.0
    %v498 = vmax.f32 %v482, 0.0
    %v499 = vmax.f32 %v483, 0.0
    %v500 = vmax.f32 %v484, 0.0
    %v501 = vmax.f32 %v485, 0.0
    %v502 = vmax.f32 %v486, 0.0
    %v503 = vmax.f32 %v487, 0.0
    %v504 = vmax.f32 %v488, 0.0
    %v505 = vmax.f32 %v489, 0.0
    %v506 = vmax.f32 %v490, 0.0
    %v507 = vld [vmem:[#allocation8] sm:$0xff]
    %v508 = vld [vmem:[#allocation8 + $0x8] sm:$0xff]
    %v509 = vld [vmem:[#allocation8 + $0x10] sm:$0xff]
    %v510 = vld [vmem:[#allocation8 + $0x18] sm:$0xff]
    %v511 = vld [vmem:[#allocation8 + $0x20] sm:$0xff]
    %v512 = vld [vmem:[#allocation8 + $0x28] sm:$0xff]
    %v513 = vld [vmem:[#allocation8 + $0x30] sm:$0xff]
    %v514 = vld [vmem:[#allocation8 + $0x38] sm:$0xff]
    %v515 = vld [vmem:[#allocation8 + $0x40] sm:$0xff]
    %v516 = vld [vmem:[#allocation8 + $0x48] sm:$0xff]
    %v517 = vld [vmem:[#allocation8 + $0x50] sm:$0xff]
    %v518 = vld [vmem:[#allocation8 + $0x58] sm:$0xff]
    %v519 = vld [vmem:[#allocation8 + $0x60] sm:$0xff]
    %v520 = vld [vmem:[#allocation8 + $0x68] sm:$0xff]
    %v521 = vld [vmem:[#allocation8 + $0x70] sm:$0xff]
    %v522 = vld [vmem:[#allocation8 + $0x78] sm:$0xff]
    %v523 = vld [vmem:[#allocation8 + $0x80] sm:$0xff]
    %v524 = vld [vmem:[#allocation8 + $0x88] sm:$0xff]
    %v525 = vld [vmem:[#allocation8 + $0x90] sm:$0xff]
    %v526 = vld [vmem:[#allocation8 + $0x98] sm:$0xff]
    %v527 = vld [vmem:[#allocation8 + $0xa0] sm:$0xff]
    %v528 = vld [vmem:[#allocation8 + $0xa8] sm:$0xff]
    %v529 = vld [vmem:[#allocation8 + $0xb0] sm:$0xff]
    %v530 = vld [vmem:[#allocation8 + $0xb8] sm:$0xff]
    %v531 = vld [vmem:[#allocation8 + $0xc0] sm:$0xff]
    %v532 = vld [vmem:[#allocation8 + $0xc8] sm:$0xff]
    %v533 = vld [vmem:[#allocation8 + $0xd0] sm:$0xff]
    %v534 = vld [vmem:[#allocation8 + $0xd8] sm:$0xff]
    %v535 = vld [vmem:[#allocation8 + $0xe0] sm:$0xff]
    %v536 = vld [vmem:[#allocation8 + $0xe8] sm:$0xff]
    %v537 = vld [vmem:[#allocation8 + $0xf0] sm:$0xff]
    %v538 = vld [vmem:[#allocation8 + $0xf8] sm:$0xff]
    %539 = vmatprep.subr.mxu0 %v508
    %540 = vmatpush1.msra.mxu0 %v507
    %541 = vmatprep.subr.mxu0 %v510
    %542 = vmatpush1.msra.mxu0 %v509
    %543 = vmatprep.subr.mxu0 %v512
    %544 = vmatpush1.msra.mxu0 %v511
    %545 = vmatprep.subr.mxu0 %v514
    %546 = vmatpush1.msra.mxu0 %v513
    %547 = vmatprep.subr.mxu0 %v516
    %548 = vmatpush1.msra.mxu0 %v515
    %549 = vmatprep.subr.mxu0 %v518
    %550 = vmatpush1.msra.mxu0 %v517
    %551 = vmatprep.subr.mxu0 %v520
    %552 = vmatpush1.msra.mxu0 %v519
    %553 = vmatprep.subr.mxu0 %v522
    %554 = vmatpush1.msra.mxu0 %v521
    %555 = vmatprep.subr.mxu0 %v524
    %556 = vmatpush1.msra.mxu0 %v523
    %557 = vmatprep.subr.mxu0 %v526
    %558 = vmatpush1.msra.mxu0 %v525
    %559 = vmatprep.subr.mxu0 %v528
    %560 = vmatpush1.msra.mxu0 %v527
    %561 = vmatprep.subr.mxu0 %v530
    %562 = vmatpush1.msra.mxu0 %v529
    %563 = vmatprep.subr.mxu0 %v532
    %564 = vmatpush1.msra.mxu0 %v531
    %565 = vmatprep.subr.mxu0 %v534
    %566 = vmatpush1.msra.mxu0 %v533
    %567 = vmatprep.subr.mxu0 %v536
    %568 = vmatpush1.msra.mxu0 %v535
    %569 = vmatprep.subr.mxu0 %v538
    %570 = vmatpush1.msra.mxu0 %v537
    %571 = vmatprep.subr.mxu0 0.0
    %572 = vmatpush1.msra.mxu0 0.0
    %573 = vmatprep.subr.mxu0 0.0
    %574 = vmatpush1.msra.mxu0 0.0
    %575 = vmatprep.subr.mxu0 0.0
    %576 = vmatpush1.msra.mxu0 0.0
    %577 = vmatprep.subr.mxu0 0.0
    %578 = vmatpush1.msra.mxu0 0.0
    %579 = vmatprep.subr.mxu0 0.0
    %580 = vmatpush1.msra.mxu0 0.0
    %581 = vmatprep.subr.mxu0 0.0
    %582 = vmatpush1.msra.mxu0 0.0
    %583 = vmatprep.subr.mxu0 0.0
    %584 = vmatpush1.msra.mxu0 0.0
    %585 = vmatprep.subr.mxu0 0.0
    %586 = vmatpush1.msra.mxu0 0.0
    %587 = vmatprep.subr.mxu0 0.0
    %588 = vmatpush1.msra.mxu0 0.0
    %589 = vmatprep.subr.mxu0 0.0
    %590 = vmatpush1.msra.mxu0 0.0
    %591 = vmatprep.subr.mxu0 0.0
    %592 = vmatpush1.msra.mxu0 0.0
    %593 = vmatprep.subr.mxu0 0.0
    %594 = vmatpush1.msra.mxu0 0.0
    %595 = vmatprep.subr.mxu0 0.0
    %596 = vmatpush1.msra.mxu0 0.0
    %597 = vmatprep.subr.mxu0 0.0
    %598 = vmatpush1.msra.mxu0 0.0
    %599 = vmatprep.subr.mxu0 0.0
    %600 = vmatpush1.msra.mxu0 0.0
    %601 = vmatprep.subr.mxu0 0.0
    %602 = vmatpush1.msra.mxu0 0.0
    %603 = vmatprep.mubr.f32.mxu0 0.0
    %604 = vmatmul.mubr.f32.gmra.mrb[0].mxu0 %v491
    %v605 = vpop.f32.mrb[0].mxu0
    %v606 = vadd.f32 0.0, %v605
    %v607 = vpop.f32.mrb[0].mxu0
    %v608 = vadd.f32 0.0, %v607
    %609 = vmatprep.mubr.f32.mxu0 0.0
    %610 = vmatmul.mubr.f32.gmra.mrb[0].mxu0 %v492
    %v611 = vpop.f32.mrb[0].mxu0
    %v612 = vadd.f32 0.0, %v611
    %v613 = vpop.f32.mrb[0].mxu0
    %v614 = vadd.f32 0.0, %v613
    %615 = vmatprep.mubr.f32.mxu0 0.0
    %616 = vmatmul.mubr.f32.gmra.mrb[0].mxu0 %v493
    %v617 = vpop.f32.mrb[0].mxu0
    %v618 = vadd.f32 0.0, %v617
    %v619 = vpop.f32.mrb[0].mxu0
    %v620 = vadd.f32 0.0, %v619
    %621 = vmatprep.mubr.f32.mxu0 0.0
    %622 = vmatmul.mubr.f32.gmra.mrb[0].mxu0 %v494
    %v623 = vpop.f32.mrb[0].mxu0
    %v624 = vadd.f32 0.0, %v623
    %v625 = vpop.f32.mrb[0].mxu0
    %v626 = vadd.f32 0.0, %v625
    %627 = vmatprep.mubr.f32.mxu0 0.0
    %628 = vmatmul.mubr.f32.gmra.mrb[0].mxu0 %v495
    %v629 = vpop.f32.mrb[0].mxu0
    %v630 = vadd.f32 0.0, %v629
    %v631 = vpop.f32.mrb[0].mxu0
    %v632 = vadd.f32 0.0, %v631
    %633 = vmatprep.mubr.f32.mxu0 0.0
    %634 = vmatmul.mubr.f32.gmra.mrb[0].mxu0 %v496
    %v635 = vpop.f32.mrb[0].mxu0
    %v636 = vadd.f32 0.0, %v635
    %v637 = vpop.f32.mrb[0].mxu0
    %v638 = vadd.f32 0.0, %v637
    %639 = vmatprep.mubr.f32.mxu0 0.0
    %640 = vmatmul.mubr.f32.gmra.mrb[0].mxu0 %v497
    %v641 = vpop.f32.mrb[0].mxu0
    %v642 = vadd.f32 0.0, %v641
    %v643 = vpop.f32.mrb[0].mxu0
    %v644 = vadd.f32 0.0, %v643
    %645 = vmatprep.mubr.f32.mxu0 0.0
    %646 = vmatmul.mubr.f32.gmra.mrb[0].mxu0 %v498
    %v647 = vpop.f32.mrb[0].mxu0
    %v648 = vadd.f32 0.0, %v647
    %v649 = vpop.f32.mrb[0].mxu0
    %v650 = vadd.f32 0.0, %v649
    %651 = vmatprep.mubr.f32.mxu0 0.0
    %652 = vmatmul.mubr.f32.gmra.mrb[0].mxu0 %v499
    %v653 = vpop.f32.mrb[0].mxu0
    %v654 = vadd.f32 0.0, %v653
    %v655 = vpop.f32.mrb[0].mxu0
    %v656 = vadd.f32 0.0, %v655
    %657 = vmatprep.mubr.f32.mxu0 0.0
    %658 = vmatmul.mubr.f32.gmra.mrb[0].mxu0 %v500
    %v659 = vpop.f32.mrb[0].mxu0
    %v660 = vadd.f32 0.0, %v659
    %v661 = vpop.f32.mrb[0].mxu0
    %v662 = vadd.f32 0.0, %v661
    %663 = vmatprep.mubr.f32.mxu0 0.0
    %664 = vmatmul.mubr.f32.gmra.mrb[0].mxu0 %v501
    %v665 = vpop.f32.mrb[0].mxu0
    %v666 = vadd.f32 0.0, %v665
    %v667 = vpop.f32.mrb[0].mxu0
    %v668 = vadd.f32 0.0, %v667
    %669 = vmatprep.mubr.f32.mxu0 0.0
    %670 = vmatmul.mubr.f32.gmra.mrb[0].mxu0 %v502
    %v671 = vpop.f32.mrb[0].mxu0
    %v672 = vadd.f32 0.0, %v671
    %v673 = vpop.f32.mrb[0].mxu0
    %v674 = vadd.f32 0.0, %v673
    %675 = vmatprep.mubr.f32.mxu0 0.0
    %676 = vmatmul.mubr.f32.gmra.mrb[0].mxu0 %v503
    %v677 = vpop.f32.mrb[0].mxu0
    %v678 = vadd.f32 0.0, %v677
    %v679 = vpop.f32.mrb[0].mxu0
    %v680 = vadd.f32 0.0, %v679
    %681 = vmatprep.mubr.f32.mxu0 0.0
    %682 = vmatmul.mubr.f32.gmra.mrb[0].mxu0 %v504
    %v683 = vpop.f32.mrb[0].mxu0
    %v684 = vadd.f32 0.0, %v683
    %v685 = vpop.f32.mrb[0].mxu0
    %v686 = vadd.f32 0.0, %v685
    %687 = vmatprep.mubr.f32.mxu0 0.0
    %688 = vmatmul.mubr.f32.gmra.mrb[0].mxu0 %v505
    %v689 = vpop.f32.mrb[0].mxu0
    %v690 = vadd.f32 0.0, %v689
    %v691 = vpop.f32.mrb[0].mxu0
    %v692 = vadd.f32 0.0, %v691
    %693 = vmatprep.mubr.f32.mxu0 0.0
    %694 = vmatmul.mubr.f32.gmra.mrb[0].mxu0 %v506
    %v695 = vpop.f32.mrb[0].mxu0
    %v696 = vadd.f32 0.0, %v695
    %v697 = vpop.f32.mrb[0].mxu0
    %v698 = vadd.f32 0.0, %v697
    %699 = vdwg.mxu0
    %700 = vmatprep.subr.mxu0 0.0
    %701 = vmatpush1.msra.mxu0 %v606
    %702 = vmatprep.subr.mxu0 0.0
    %703 = vmatpush1.msra.mxu0 %v612
    %704 = vmatprep.subr.mxu0 0.0
    %705 = vmatpush1.msra.mxu0 %v618
    %706 = vmatprep.subr.mxu0 0.0
    %707 = vmatpush1.msra.mxu0 %v624
    %708 = vmatprep.subr.mxu0 0.0
    %709 = vmatpush1.msra.mxu0 %v630
    %710 = vmatprep.subr.mxu0 0.0
    %711 = vmatpush1.msra.mxu0 %v636
    %712 = vmatprep.subr.mxu0 0.0
    %713 = vmatpush1.msra.mxu0 %v642
    %714 = vmatprep.subr.mxu0 0.0
    %715 = vmatpush1.msra.mxu0 %v648
    %716 = vmatprep.subr.mxu0 0.0
    %717 = vmatpush1.msra.mxu0 %v654
    %718 = vmatprep.subr.mxu0 0.0
    %719 = vmatpush1.msra.mxu0 %v660
    %720 = vmatprep.subr.mxu0 0.0
    %721 = vmatpush1.msra.mxu0 %v666
    %722 = vmatprep.subr.mxu0 0.0
    %723 = vmatpush1.msra.mxu0 %v672
    %724 = vmatprep.subr.mxu0 0.0
    %725 = vmatpush1.msra.mxu0 %v678
    %726 = vmatprep.subr.mxu0 0.0
    %727 = vmatpush1.msra.mxu0 %v684
    %728 = vmatprep.subr.mxu0 0.0
    %729 = vmatpush1.msra.mxu0 %v690
    %730 = vmatprep.subr.mxu0 0.0
    %731 = vmatpush1.msra.mxu0 %v696
    %732 = vmatprep.subr.mxu0 0.0
    %733 = vmatpush1.msra.mxu0 0.0
    %734 = vmatprep.subr.mxu0 0.0
    %735 = vmatpush1.msra.mxu0 0.0
    %736 = vmatprep.subr.mxu0 0.0
    %737 = vmatpush1.msra.mxu0 0.0
    %738 = vmatprep.subr.mxu0 0.0
    %739 = vmatpush1.msra.mxu0 0.0
    %740 = vmatprep.subr.mxu0 0.0
    %741 = vmatpush1.msra.mxu0 0.0
    %742 = vmatprep.subr.mxu0 0.0
    %743 = vmatpush1.msra.mxu0 0.0
    %744 = vmatprep.subr.mxu0 0.0
    %745 = vmatpush1.msra.mxu0 0.0
    %746 = vmatprep.subr.mxu0 0.0
    %747 = vmatpush1.msra.mxu0 0.0
    %748 = vmatprep.subr.mxu0 0.0
    %749 = vmatpush1.msra.mxu0 0.0
    %750 = vmatprep.subr.mxu0 0.0
    %751 = vmatpush1.msra.mxu0 0.0
    %752 = vmatprep.subr.mxu0 0.0
    %753 = vmatpush1.msra.mxu0 0.0
    %754 = vmatprep.subr.mxu0 0.0
    %755 = vmatpush1.msra.mxu0 0.0
    %756 = vmatprep.subr.mxu0 0.0
    %757 = vmatpush1.msra.mxu0 0.0
    %758 = vmatprep.subr.mxu0 0.0
    %759 = vmatpush1.msra.mxu0 0.0
    %760 = vmatprep.subr.mxu0 0.0
    %761 = vmatpush1.msra.mxu0 0.0
    %762 = vmatprep.subr.mxu0 0.0
    %763 = vmatpush1.msra.mxu0 0.0
    %764 = vmatprep.mubr.f32.mxu0 0.0
    %765 = vmatmul.mubr.f32.gmra.mrb[0].mxu0 %v98
    %v766 = vpop.f32.mrb[0].mxu0
    %v767 = vadd.f32 %v608, %v766
    %v768 = vpop.f32.mrb[0].mxu0
    %769 = vmatprep.mubr.f32.mxu0 0.0
    %770 = vmatmul.mubr.f32.gmra.mrb[0].mxu0 %v99
    %v771 = vpop.f32.mrb[0].mxu0
    %v772 = vadd.f32 %v614, %v771
    %v773 = vpop.f32.mrb[0].mxu0
    %774 = vmatprep.mubr.f32.mxu0 0.0
    %775 = vmatmul.mubr.f32.gmra.mrb[0].mxu0 %v100
    %v776 = vpop.f32.mrb[0].mxu0
    %v777 = vadd.f32 %v620, %v776
    %v778 = vpop.f32.mrb[0].mxu0
    %779 = vmatprep.mubr.f32.mxu0 0.0
    %780 = vmatmul.mubr.f32.gmra.mrb[0].mxu0 %v101
    %v781 = vpop.f32.mrb[0].mxu0
    %v782 = vadd.f32 %v626, %v781
    %v783 = vpop.f32.mrb[0].mxu0
    %784 = vmatprep.mubr.f32.mxu0 0.0
    %785 = vmatmul.mubr.f32.gmra.mrb[0].mxu0 %v102
    %v786 = vpop.f32.mrb[0].mxu0
    %v787 = vadd.f32 %v632, %v786
    %v788 = vpop.f32.mrb[0].mxu0
    %789 = vmatprep.mubr.f32.mxu0 0.0
    %790 = vmatmul.mubr.f32.gmra.mrb[0].mxu0 %v103
    %v791 = vpop.f32.mrb[0].mxu0
    %v792 = vadd.f32 %v638, %v791
    %v793 = vpop.f32.mrb[0].mxu0
    %794 = vmatprep.mubr.f32.mxu0 0.0
    %795 = vmatmul.mubr.f32.gmra.mrb[0].mxu0 %v104
    %v796 = vpop.f32.mrb[0].mxu0
    %v797 = vadd.f32 %v644, %v796
    %v798 = vpop.f32.mrb[0].mxu0
    %799 = vmatprep.mubr.f32.mxu0 0.0
    %800 = vmatmul.mubr.f32.gmra.mrb[0].mxu0 %v105
    %v801 = vpop.f32.mrb[0].mxu0
    %v802 = vadd.f32 %v650, %v801
    %v803 = vpop.f32.mrb[0].mxu0
    %804 = vmatprep.mubr.f32.mxu0 0.0
    %805 = vmatmul.mubr.f32.gmra.mrb[0].mxu0 %v106
    %v806 = vpop.f32.mrb[0].mxu0
    %v807 = vadd.f32 %v656, %v806
    %v808 = vpop.f32.mrb[0].mxu0
    %809 = vmatprep.mubr.f32.mxu0 0.0
    %810 = vmatmul.mubr.f32.gmra.mrb[0].mxu0 %v107
    %v811 = vpop.f32.mrb[0].mxu0
    %v812 = vadd.f32 %v662, %v811
    %v813 = vpop.f32.mrb[0].mxu0
    %814 = vmatprep.mubr.f32.mxu0 0.0
    %815 = vmatmul.mubr.f32.gmra.mrb[0].mxu0 %v108
    %v816 = vpop.f32.mrb[0].mxu0
    %v817 = vadd.f32 %v668, %v816
    %v818 = vpop.f32.mrb[0].mxu0
    %819 = vmatprep.mubr.f32.mxu0 0.0
    %820 = vmatmul.mubr.f32.gmra.mrb[0].mxu0 %v109
    %v821 = vpop.f32.mrb[0].mxu0
    %v822 = vadd.f32 %v674, %v821
    %v823 = vpop.f32.mrb[0].mxu0
    %824 = vmatprep.mubr.f32.mxu0 0.0
    %825 = vmatmul.mubr.f32.gmra.mrb[0].mxu0 %v110
    %v826 = vpop.f32.mrb[0].mxu0
    %v827 = vadd.f32 %v680, %v826
    %v828 = vpop.f32.mrb[0].mxu0
    %829 = vmatprep.mubr.f32.mxu0 0.0
    %830 = vmatmul.mubr.f32.gmra.mrb[0].mxu0 %v111
    %v831 = vpop.f32.mrb[0].mxu0
    %v832 = vadd.f32 %v686, %v831
    %v833 = vpop.f32.mrb[0].mxu0
    %834 = vmatprep.mubr.f32.mxu0 0.0
    %835 = vmatmul.mubr.f32.gmra.mrb[0].mxu0 %v112
    %v836 = vpop.f32.mrb[0].mxu0
    %v837 = vadd.f32 %v692, %v836
    %v838 = vpop.f32.mrb[0].mxu0
    %839 = vmatprep.mubr.f32.mxu0 0.0
    %840 = vmatmul.mubr.f32.gmra.mrb[0].mxu0 %v113
    %v841 = vpop.f32.mrb[0].mxu0
    %v842 = vadd.f32 %v698, %v841
    %v843 = vpop.f32.mrb[0].mxu0
    %844 = vdwg.mxu0
    %v845 = vld [vmem:[%s6] sm:$0x1]
    %v847 = vlaneseq
    %v848 = vshrl.u32 %v847, 7
    %v849 = vsub.s32 0, %v848
    %v850 = vrot.slane %v845, %v849
    %v852 = vadd.f32 %v767, %v850
    %v853 = vadd.f32 %v772, %v850
    %v854 = vadd.f32 %v777, %v850
    %v855 = vadd.f32 %v782, %v850
    %v856 = vadd.f32 %v787, %v850
    %v857 = vadd.f32 %v792, %v850
    %v858 = vadd.f32 %v797, %v850
    %v859 = vadd.f32 %v802, %v850
    %v860 = vadd.f32 %v807, %v850
    %v861 = vadd.f32 %v812, %v850
    %v862 = vadd.f32 %v817, %v850
    %v863 = vadd.f32 %v822, %v850
    %v864 = vadd.f32 %v827, %v850
    %v865 = vadd.f32 %v832, %v850
    %v866 = vadd.f32 %v837, %v850
    %v867 = vadd.f32 %v842, %v850
    %v868 = vmax.f32 %v852, 0.0
    %v869 = vmax.f32 %v853, 0.0
    %v870 = vmax.f32 %v854, 0.0
    %v871 = vmax.f32 %v855, 0.0
    %v872 = vmax.f32 %v856, 0.0
    %v873 = vmax.f32 %v857, 0.0
    %v874 = vmax.f32 %v858, 0.0
    %v875 = vmax.f32 %v859, 0.0
    %v876 = vmax.f32 %v860, 0.0
    %v877 = vmax.f32 %v861, 0.0
    %v878 = vmax.f32 %v862, 0.0
    %v879 = vmax.f32 %v863, 0.0
    %v880 = vmax.f32 %v864, 0.0
    %v881 = vmax.f32 %v865, 0.0
    %v882 = vmax.f32 %v866, 0.0
    %v883 = vmax.f32 %v867, 0.0
    %v884 = vld [vmem:[#allocation10] sm:$0xff]
    %v885 = vld [vmem:[#allocation10 + $0x8] sm:$0xff]
    %v886 = vld [vmem:[#allocation10 + $0x10] sm:$0xff]
    %v887 = vld [vmem:[#allocation10 + $0x18] sm:$0xff]
    %v888 = vld [vmem:[#allocation10 + $0x20] sm:$0xff]
    %v889 = vld [vmem:[#allocation10 + $0x28] sm:$0xff]
    %v890 = vld [vmem:[#allocation10 + $0x30] sm:$0xff]
    %v891 = vld [vmem:[#allocation10 + $0x38] sm:$0xff]
    %v892 = vld [vmem:[#allocation10 + $0x40] sm:$0xff]
    %v893 = vld [vmem:[#allocation10 + $0x48] sm:$0xff]
    %v894 = vld [vmem:[#allocation10 + $0x50] sm:$0xff]
    %v895 = vld [vmem:[#allocation10 + $0x58] sm:$0xff]
    %v896 = vld [vmem:[#allocation10 + $0x60] sm:$0xff]
    %v897 = vld [vmem:[#allocation10 + $0x68] sm:$0xff]
    %v898 = vld [vmem:[#allocation10 + $0x70] sm:$0xff]
    %v899 = vld [vmem:[#allocation10 + $0x78] sm:$0xff]
    %v900 = vld [vmem:[#allocation10 + $0x80] sm:$0xff]
    %v901 = vld [vmem:[#allocation10 + $0x88] sm:$0xff]
    %v902 = vld [vmem:[#allocation10 + $0x90] sm:$0xff]
    %v903 = vld [vmem:[#allocation10 + $0x98] sm:$0xff]
    %v904 = vld [vmem:[#allocation10 + $0xa0] sm:$0xff]
    %v905 = vld [vmem:[#allocation10 + $0xa8] sm:$0xff]
    %v906 = vld [vmem:[#allocation10 + $0xb0] sm:$0xff]
    %v907 = vld [vmem:[#allocation10 + $0xb8] sm:$0xff]
    %v908 = vld [vmem:[#allocation10 + $0xc0] sm:$0xff]
    %v909 = vld [vmem:[#allocation10 + $0xc8] sm:$0xff]
    %v910 = vld [vmem:[#allocation10 + $0xd0] sm:$0xff]
    %v911 = vld [vmem:[#allocation10 + $0xd8] sm:$0xff]
    %v912 = vld [vmem:[#allocation10 + $0xe0] sm:$0xff]
    %v913 = vld [vmem:[#allocation10 + $0xe8] sm:$0xff]
    %v914 = vld [vmem:[#allocation10 + $0xf0] sm:$0xff]
    %v915 = vld [vmem:[#allocation10 + $0xf8] sm:$0xff]
    %916 = vmatprep.subr.mxu0 %v885
    %917 = vmatpush1.msra.mxu0 %v884
    %918 = vmatprep.subr.mxu0 %v887
    %919 = vmatpush1.msra.mxu0 %v886
    %920 = vmatprep.subr.mxu0 %v889
    %921 = vmatpush1.msra.mxu0 %v888
    %922 = vmatprep.subr.mxu0 %v891
    %923 = vmatpush1.msra.mxu0 %v890
    %924 = vmatprep.subr.mxu0 %v893
    %925 = vmatpush1.msra.mxu0 %v892
    %926 = vmatprep.subr.mxu0 %v895
    %927 = vmatpush1.msra.mxu0 %v894
    %928 = vmatprep.subr.mxu0 %v897
    %929 = vmatpush1.msra.mxu0 %v896
    %930 = vmatprep.subr.mxu0 %v899
    %931 = vmatpush1.msra.mxu0 %v898
    %932 = vmatprep.subr.mxu0 %v901
    %933 = vmatpush1.msra.mxu0 %v900
    %934 = vmatprep.subr.mxu0 %v903
    %935 = vmatpush1.msra.mxu0 %v902
    %936 = vmatprep.subr.mxu0 %v905
    %937 = vmatpush1.msra.mxu0 %v904
    %938 = vmatprep.subr.mxu0 %v907
    %939 = vmatpush1.msra.mxu0 %v906
    %940 = vmatprep.subr.mxu0 %v909
    %941 = vmatpush1.msra.mxu0 %v908
    %942 = vmatprep.subr.mxu0 %v911
    %943 = vmatpush1.msra.mxu0 %v910
    %944 = vmatprep.subr.mxu0 %v913
    %945 = vmatpush1.msra.mxu0 %v912
    %946 = vmatprep.subr.mxu0 %v915
    %947 = vmatpush1.msra.mxu0 %v914
    %948 = vmatprep.subr.mxu0 0.0
    %949 = vmatpush1.msra.mxu0 0.0
    %950 = vmatprep.subr.mxu0 0.0
    %951 = vmatpush1.msra.mxu0 0.0
    %952 = vmatprep.subr.mxu0 0.0
    %953 = vmatpush1.msra.mxu0 0.0
    %954 = vmatprep.subr.mxu0 0.0
    %955 = vmatpush1.msra.mxu0 0.0
    %956 = vmatprep.subr.mxu0 0.0
    %957 = vmatpush1.msra.mxu0 0.0
    %958 = vmatprep.subr.mxu0 0.0
    %959 = vmatpush1.msra.mxu0 0.0
    %960 = vmatprep.subr.mxu0 0.0
    %961 = vmatpush1.msra.mxu0 0.0
    %962 = vmatprep.subr.mxu0 0.0
    %963 = vmatpush1.msra.mxu0 0.0
    %964 = vmatprep.subr.mxu0 0.0
    %965 = vmatpush1.msra.mxu0 0.0
    %966 = vmatprep.subr.mxu0 0.0
    %967 = vmatpush1.msra.mxu0 0.0
    %968 = vmatprep.subr.mxu0 0.0
    %969 = vmatpush1.msra.mxu0 0.0
    %970 = vmatprep.subr.mxu0 0.0
    %971 = vmatpush1.msra.mxu0 0.0
    %972 = vmatprep.subr.mxu0 0.0
    %973 = vmatpush1.msra.mxu0 0.0
    %974 = vmatprep.subr.mxu0 0.0
    %975 = vmatpush1.msra.mxu0 0.0
    %976 = vmatprep.subr.mxu0 0.0
    %977 = vmatpush1.msra.mxu0 0.0
    %978 = vmatprep.subr.mxu0 0.0
    %979 = vmatpush1.msra.mxu0 0.0
    %980 = vmatprep.mubr.f32.mxu0 0.0
    %981 = vmatmul.mubr.f32.gmra.mrb[0].mxu0 %v868
    %v982 = vpop.f32.mrb[0].mxu0
    %v983 = vadd.f32 0.0, %v982
    %v984 = vpop.f32.mrb[0].mxu0
    %v985 = vadd.f32 0.0, %v984
    %986 = vmatprep.mubr.f32.mxu0 0.0
    %987 = vmatmul.mubr.f32.gmra.mrb[0].mxu0 %v869
    %v988 = vpop.f32.mrb[0].mxu0
    %v989 = vadd.f32 0.0, %v988
    %v990 = vpop.f32.mrb[0].mxu0
    %v991 = vadd.f32 0.0, %v990
    %992 = vmatprep.mubr.f32.mxu0 0.0
    %993 = vmatmul.mubr.f32.gmra.mrb[0].mxu0 %v870
    %v994 = vpop.f32.mrb[0].mxu0
    %v995 = vadd.f32 0.0, %v994
    %v996 = vpop.f32.mrb[0].mxu0
    %v997 = vadd.f32 0.0, %v996
    %998 = vmatprep.mubr.f32.mxu0 0.0
    %999 = vmatmul.mubr.f32.gmra.mrb[0].mxu0 %v871
    %v1000 = vpop.f32.mrb[0].mxu0
    %v1001 = vadd.f32 0.0, %v1000
    %v1002 = vpop.f32.mrb[0].mxu0
    %v1003 = vadd.f32 0.0, %v1002
    %1004 = vmatprep.mubr.f32.mxu0 0.0
    %1005 = vmatmul.mubr.f32.gmra.mrb[0].mxu0 %v872
    %v1006 = vpop.f32.mrb[0].mxu0
    %v1007 = vadd.f32 0.0, %v1006
    %v1008 = vpop.f32.mrb[0].mxu0
    %v1009 = vadd.f32 0.0, %v1008
    %1010 = vmatprep.mubr.f32.mxu0 0.0
    %1011 = vmatmul.mubr.f32.gmra.mrb[0].mxu0 %v873
    %v1012 = vpop.f32.mrb[0].mxu0
    %v1013 = vadd.f32 0.0, %v1012
    %v1014 = vpop.f32.mrb[0].mxu0
    %v1015 = vadd.f32 0.0, %v1014
    %1016 = vmatprep.mubr.f32.mxu0 0.0
    %1017 = vmatmul.mubr.f32.gmra.mrb[0].mxu0 %v874
    %v1018 = vpop.f32.mrb[0].mxu0
    %v1019 = vadd.f32 0.0, %v1018
    %v1020 = vpop.f32.mrb[0].mxu0
    %v1021 = vadd.f32 0.0, %v1020
    %1022 = vmatprep.mubr.f32.mxu0 0.0
    %1023 = vmatmul.mubr.f32.gmra.mrb[0].mxu0 %v875
    %v1024 = vpop.f32.mrb[0].mxu0
    %v1025 = vadd.f32 0.0, %v1024
    %v1026 = vpop.f32.mrb[0].mxu0
    %v1027 = vadd.f32 0.0, %v1026
    %1028 = vmatprep.mubr.f32.mxu0 0.0
    %1029 = vmatmul.mubr.f32.gmra.mrb[0].mxu0 %v876
    %v1030 = vpop.f32.mrb[0].mxu0
    %v1031 = vadd.f32 0.0, %v1030
    %v1032 = vpop.f32.mrb[0].mxu0
    %v1033 = vadd.f32 0.0, %v1032
    %1034 = vmatprep.mubr.f32.mxu0 0.0
    %1035 = vmatmul.mubr.f32.gmra.mrb[0].mxu0 %v877
    %v1036 = vpop.f32.mrb[0].mxu0
    %v1037 = vadd.f32 0.0, %v1036
    %v1038 = vpop.f32.mrb[0].mxu0
    %v1039 = vadd.f32 0.0, %v1038
    %1040 = vmatprep.mubr.f32.mxu0 0.0
    %1041 = vmatmul.mubr.f32.gmra.mrb[0].mxu0 %v878
    %v1042 = vpop.f32.mrb[0].mxu0
    %v1043 = vadd.f32 0.0, %v1042
    %v1044 = vpop.f32.mrb[0].mxu0
    %v1045 = vadd.f32 0.0, %v1044
    %1046 = vmatprep.mubr.f32.mxu0 0.0
    %1047 = vmatmul.mubr.f32.gmra.mrb[0].mxu0 %v879
    %v1048 = vpop.f32.mrb[0].mxu0
    %v1049 = vadd.f32 0.0, %v1048
    %v1050 = vpop.f32.mrb[0].mxu0
    %v1051 = vadd.f32 0.0, %v1050
    %1052 = vmatprep.mubr.f32.mxu0 0.0
    %1053 = vmatmul.mubr.f32.gmra.mrb[0].mxu0 %v880
    %v1054 = vpop.f32.mrb[0].mxu0
    %v1055 = vadd.f32 0.0, %v1054
    %v1056 = vpop.f32.mrb[0].mxu0
    %v1057 = vadd.f32 0.0, %v1056
    %1058 = vmatprep.mubr.f32.mxu0 0.0
    %1059 = vmatmul.mubr.f32.gmra.mrb[0].mxu0 %v881
    %v1060 = vpop.f32.mrb[0].mxu0
    %v1061 = vadd.f32 0.0, %v1060
    %v1062 = vpop.f32.mrb[0].mxu0
    %v1063 = vadd.f32 0.0, %v1062
    %1064 = vmatprep.mubr.f32.mxu0 0.0
    %1065 = vmatmul.mubr.f32.gmra.mrb[0].mxu0 %v882
    %v1066 = vpop.f32.mrb[0].mxu0
    %v1067 = vadd.f32 0.0, %v1066
    %v1068 = vpop.f32.mrb[0].mxu0
    %v1069 = vadd.f32 0.0, %v1068
    %1070 = vmatprep.mubr.f32.mxu0 0.0
    %1071 = vmatmul.mubr.f32.gmra.mrb[0].mxu0 %v883
    %v1072 = vpop.f32.mrb[0].mxu0
    %v1073 = vadd.f32 0.0, %v1072
    %v1074 = vpop.f32.mrb[0].mxu0
    %v1075 = vadd.f32 0.0, %v1074
    %1076 = vdwg.mxu0
    %1077 = vmatprep.subr.mxu0 0.0
    %1078 = vmatpush1.msra.mxu0 %v983
    %1079 = vmatprep.subr.mxu0 0.0
    %1080 = vmatpush1.msra.mxu0 %v989
    %1081 = vmatprep.subr.mxu0 0.0
    %1082 = vmatpush1.msra.mxu0 %v995
    %1083 = vmatprep.subr.mxu0 0.0
    %1084 = vmatpush1.msra.mxu0 %v1001
    %1085 = vmatprep.subr.mxu0 0.0
    %1086 = vmatpush1.msra.mxu0 %v1007
    %1087 = vmatprep.subr.mxu0 0.0
    %1088 = vmatpush1.msra.mxu0 %v1013
    %1089 = vmatprep.subr.mxu0 0.0
    %1090 = vmatpush1.msra.mxu0 %v1019
    %1091 = vmatprep.subr.mxu0 0.0
    %1092 = vmatpush1.msra.mxu0 %v1025
    %1093 = vmatprep.subr.mxu0 0.0
    %1094 = vmatpush1.msra.mxu0 %v1031
    %1095 = vmatprep.subr.mxu0 0.0
    %1096 = vmatpush1.msra.mxu0 %v1037
    %1097 = vmatprep.subr.mxu0 0.0
    %1098 = vmatpush1.msra.mxu0 %v1043
    %1099 = vmatprep.subr.mxu0 0.0
    %1100 = vmatpush1.msra.mxu0 %v1049
    %1101 = vmatprep.subr.mxu0 0.0
    %1102 = vmatpush1.msra.mxu0 %v1055
    %1103 = vmatprep.subr.mxu0 0.0
    %1104 = vmatpush1.msra.mxu0 %v1061
    %1105 = vmatprep.subr.mxu0 0.0
    %1106 = vmatpush1.msra.mxu0 %v1067
    %1107 = vmatprep.subr.mxu0 0.0
    %1108 = vmatpush1.msra.mxu0 %v1073
    %1109 = vmatprep.subr.mxu0 0.0
    %1110 = vmatpush1.msra.mxu0 0.0
    %1111 = vmatprep.subr.mxu0 0.0
    %1112 = vmatpush1.msra.mxu0 0.0
    %1113 = vmatprep.subr.mxu0 0.0
    %1114 = vmatpush1.msra.mxu0 0.0
    %1115 = vmatprep.subr.mxu0 0.0
    %1116 = vmatpush1.msra.mxu0 0.0
    %1117 = vmatprep.subr.mxu0 0.0
    %1118 = vmatpush1.msra.mxu0 0.0
    %1119 = vmatprep.subr.mxu0 0.0
    %1120 = vmatpush1.msra.mxu0 0.0
    %1121 = vmatprep.subr.mxu0 0.0
    %1122 = vmatpush1.msra.mxu0 0.0
    %1123 = vmatprep.subr.mxu0 0.0
    %1124 = vmatpush1.msra.mxu0 0.0
    %1125 = vmatprep.subr.mxu0 0.0
    %1126 = vmatpush1.msra.mxu0 0.0
    %1127 = vmatprep.subr.mxu0 0.0
    %1128 = vmatpush1.msra.mxu0 0.0
    %1129 = vmatprep.subr.mxu0 0.0
    %1130 = vmatpush1.msra.mxu0 0.0
    %1131 = vmatprep.subr.mxu0 0.0
    %1132 = vmatpush1.msra.mxu0 0.0
    %1133 = vmatprep.subr.mxu0 0.0
    %1134 = vmatpush1.msra.mxu0 0.0
    %1135 = vmatprep.subr.mxu0 0.0
    %1136 = vmatpush1.msra.mxu0 0.0
    %1137 = vmatprep.subr.mxu0 0.0
    %1138 = vmatpush1.msra.mxu0 0.0
    %1139 = vmatprep.subr.mxu0 0.0
    %1140 = vmatpush1.msra.mxu0 0.0
    %1141 = vmatprep.mubr.f32.mxu0 0.0
    %1142 = vmatmul.mubr.f32.gmra.mrb[0].mxu0 %v98
    %v1143 = vpop.f32.mrb[0].mxu0
    %v1144 = vadd.f32 %v985, %v1143
    %v1145 = vpop.f32.mrb[0].mxu0
    %1146 = vmatprep.mubr.f32.mxu0 0.0
    %1147 = vmatmul.mubr.f32.gmra.mrb[0].mxu0 %v99
    %v1148 = vpop.f32.mrb[0].mxu0
    %v1149 = vadd.f32 %v991, %v1148
    %v1150 = vpop.f32.mrb[0].mxu0
    %1151 = vmatprep.mubr.f32.mxu0 0.0
    %1152 = vmatmul.mubr.f32.gmra.mrb[0].mxu0 %v100
    %v1153 = vpop.f32.mrb[0].mxu0
    %v1154 = vadd.f32 %v997, %v1153
    %v1155 = vpop.f32.mrb[0].mxu0
    %1156 = vmatprep.mubr.f32.mxu0 0.0
    %1157 = vmatmul.mubr.f32.gmra.mrb[0].mxu0 %v101
    %v1158 = vpop.f32.mrb[0].mxu0
    %v1159 = vadd.f32 %v1003, %v1158
    %v1160 = vpop.f32.mrb[0].mxu0
    %1161 = vmatprep.mubr.f32.mxu0 0.0
    %1162 = vmatmul.mubr.f32.gmra.mrb[0].mxu0 %v102
    %v1163 = vpop.f32.mrb[0].mxu0
    %v1164 = vadd.f32 %v1009, %v1163
    %v1165 = vpop.f32.mrb[0].mxu0
    %1166 = vmatprep.mubr.f32.mxu0 0.0
    %1167 = vmatmul.mubr.f32.gmra.mrb[0].mxu0 %v103
    %v1168 = vpop.f32.mrb[0].mxu0
    %v1169 = vadd.f32 %v1015, %v1168
    %v1170 = vpop.f32.mrb[0].mxu0
    %1171 = vmatprep.mubr.f32.mxu0 0.0
    %1172 = vmatmul.mubr.f32.gmra.mrb[0].mxu0 %v104
    %v1173 = vpop.f32.mrb[0].mxu0
    %v1174 = vadd.f32 %v1021, %v1173
    %v1175 = vpop.f32.mrb[0].mxu0
    %1176 = vmatprep.mubr.f32.mxu0 0.0
    %1177 = vmatmul.mubr.f32.gmra.mrb[0].mxu0 %v105
    %v1178 = vpop.f32.mrb[0].mxu0
    %v1179 = vadd.f32 %v1027, %v1178
    %v1180 = vpop.f32.mrb[0].mxu0
    %1181 = vmatprep.mubr.f32.mxu0 0.0
    %1182 = vmatmul.mubr.f32.gmra.mrb[0].mxu0 %v106
    %v1183 = vpop.f32.mrb[0].mxu0
    %v1184 = vadd.f32 %v1033, %v1183
    %v1185 = vpop.f32.mrb[0].mxu0
    %1186 = vmatprep.mubr.f32.mxu0 0.0
    %1187 = vmatmul.mubr.f32.gmra.mrb[0].mxu0 %v107
    %v1188 = vpop.f32.mrb[0].mxu0
    %v1189 = vadd.f32 %v1039, %v1188
    %v1190 = vpop.f32.mrb[0].mxu0
    %1191 = vmatprep.mubr.f32.mxu0 0.0
    %1192 = vmatmul.mubr.f32.gmra.mrb[0].mxu0 %v108
    %v1193 = vpop.f32.mrb[0].mxu0
    %v1194 = vadd.f32 %v1045, %v1193
    %v1195 = vpop.f32.mrb[0].mxu0
    %1196 = vmatprep.mubr.f32.mxu0 0.0
    %1197 = vmatmul.mubr.f32.gmra.mrb[0].mxu0 %v109
    %v1198 = vpop.f32.mrb[0].mxu0
    %v1199 = vadd.f32 %v1051, %v1198
    %v1200 = vpop.f32.mrb[0].mxu0
    %1201 = vmatprep.mubr.f32.mxu0 0.0
    %1202 = vmatmul.mubr.f32.gmra.mrb[0].mxu0 %v110
    %v1203 = vpop.f32.mrb[0].mxu0
    %v1204 = vadd.f32 %v1057, %v1203
    %v1205 = vpop.f32.mrb[0].mxu0
    %1206 = vmatprep.mubr.f32.mxu0 0.0
    %1207 = vmatmul.mubr.f32.gmra.mrb[0].mxu0 %v111
    %v1208 = vpop.f32.mrb[0].mxu0
    %v1209 = vadd.f32 %v1063, %v1208
    %v1210 = vpop.f32.mrb[0].mxu0
    %1211 = vmatprep.mubr.f32.mxu0 0.0
    %1212 = vmatmul.mubr.f32.gmra.mrb[0].mxu0 %v112
    %v1213 = vpop.f32.mrb[0].mxu0
    %v1214 = vadd.f32 %v1069, %v1213
    %v1215 = vpop.f32.mrb[0].mxu0
    %1216 = vmatprep.mubr.f32.mxu0 0.0
    %1217 = vmatmul.mubr.f32.gmra.mrb[0].mxu0 %v113
    %v1218 = vpop.f32.mrb[0].mxu0
    %v1219 = vadd.f32 %v1075, %v1218
    %v1220 = vpop.f32.mrb[0].mxu0
    %1221 = vdwg.mxu0
    %v1222 = vld [vmem:[%s7] sm:$0x1]
    %v1224 = vlaneseq
    %v1225 = vshrl.u32 %v1224, 7
    %v1226 = vsub.s32 0, %v1225
    %v1227 = vrot.slane %v1222, %v1226
    %v1229 = vadd.f32 %v1144, %v1227
    %v1230 = vadd.f32 %v1149, %v1227
    %v1231 = vadd.f32 %v1154, %v1227
    %v1232 = vadd.f32 %v1159, %v1227
    %v1233 = vadd.f32 %v1164, %v1227
    %v1234 = vadd.f32 %v1169, %v1227
    %v1235 = vadd.f32 %v1174, %v1227
    %v1236 = vadd.f32 %v1179, %v1227
    %v1237 = vadd.f32 %v1184, %v1227
    %v1238 = vadd.f32 %v1189, %v1227
    %v1239 = vadd.f32 %v1194, %v1227
    %v1240 = vadd.f32 %v1199, %v1227
    %v1241 = vadd.f32 %v1204, %v1227
    %v1242 = vadd.f32 %v1209, %v1227
    %v1243 = vadd.f32 %v1214, %v1227
    %v1244 = vadd.f32 %v1219, %v1227
    %v1245 = vlaneseq
    %v1246 = vand.u32 %v1245, 127
    %vm1247 = vcmp.lt.s32.totalorder %v1246, 8
    %v1248 = vsel %vm1247, %v1229, -1e+30
    %v1249 = vsel %vm1247, %v1230, -1e+30
    %v1250 = vsel %vm1247, %v1231, -1e+30
    %v1251 = vsel %vm1247, %v1232, -1e+30
    %v1252 = vsel %vm1247, %v1233, -1e+30
    %v1253 = vsel %vm1247, %v1234, -1e+30
    %v1254 = vsel %vm1247, %v1235, -1e+30
    %v1255 = vsel %vm1247, %v1236, -1e+30
    %v1256 = vsel %vm1247, %v1237, -1e+30
    %v1257 = vsel %vm1247, %v1238, -1e+30
    %v1258 = vsel %vm1247, %v1239, -1e+30
    %v1259 = vsel %vm1247, %v1240, -1e+30
    %v1260 = vsel %vm1247, %v1241, -1e+30
    %v1261 = vsel %vm1247, %v1242, -1e+30
    %v1262 = vsel %vm1247, %v1243, -1e+30
    %v1263 = vsel %vm1247, %v1244, -1e+30
    %1264 = vmax.xlane.f32.xlu0 %v1248
    %v1265 = vpop.xlane.xlu0 %1264
    %1266 = vmax.xlane.f32.xlu0 %v1249
    %v1267 = vpop.xlane.xlu0 %1266
    %1268 = vmax.xlane.f32.xlu0 %v1250
    %v1269 = vpop.xlane.xlu0 %1268
    %1270 = vmax.xlane.f32.xlu0 %v1251
    %v1271 = vpop.xlane.xlu0 %1270
    %1272 = vmax.xlane.f32.xlu0 %v1252
    %v1273 = vpop.xlane.xlu0 %1272
    %1274 = vmax.xlane.f32.xlu0 %v1253
    %v1275 = vpop.xlane.xlu0 %1274
    %1276 = vmax.xlane.f32.xlu0 %v1254
    %v1277 = vpop.xlane.xlu0 %1276
    %1278 = vmax.xlane.f32.xlu0 %v1255
    %v1279 = vpop.xlane.xlu0 %1278
    %1280 = vmax.xlane.f32.xlu0 %v1256
    %v1281 = vpop.xlane.xlu0 %1280
    %1282 = vmax.xlane.f32.xlu0 %v1257
    %v1283 = vpop.xlane.xlu0 %1282
    %1284 = vmax.xlane.f32.xlu0 %v1258
    %v1285 = vpop.xlane.xlu0 %1284
    %1286 = vmax.xlane.f32.xlu0 %v1259
    %v1287 = vpop.xlane.xlu0 %1286
    %1288 = vmax.xlane.f32.xlu0 %v1260
    %v1289 = vpop.xlane.xlu0 %1288
    %1290 = vmax.xlane.f32.xlu0 %v1261
    %v1291 = vpop.xlane.xlu0 %1290
    %1292 = vmax.xlane.f32.xlu0 %v1262
    %v1293 = vpop.xlane.xlu0 %1292
    %1294 = vmax.xlane.f32.xlu0 %v1263
    %v1295 = vpop.xlane.xlu0 %1294
    %v1296 = vsub.f32 %v1248, %v1265
    %v1297 = vsub.f32 %v1249, %v1267
    %v1298 = vsub.f32 %v1250, %v1269
    %v1299 = vsub.f32 %v1251, %v1271
    %v1300 = vsub.f32 %v1252, %v1273
    %v1301 = vsub.f32 %v1253, %v1275
    %v1302 = vsub.f32 %v1254, %v1277
    %v1303 = vsub.f32 %v1255, %v1279
    %v1304 = vsub.f32 %v1256, %v1281
    %v1305 = vsub.f32 %v1257, %v1283
    %v1306 = vsub.f32 %v1258, %v1285
    %v1307 = vsub.f32 %v1259, %v1287
    %v1308 = vsub.f32 %v1260, %v1289
    %v1309 = vsub.f32 %v1261, %v1291
    %v1310 = vsub.f32 %v1262, %v1293
    %v1311 = vsub.f32 %v1263, %v1295
    %v1312 = vmul.f32 %v1296, 1.442695
    %v1313 = vpow.pop %v1312
    %v1314 = vmul.f32 %v1297, 1.442695
    %v1315 = vpow.pop %v1314
    %v1316 = vmul.f32 %v1298, 1.442695
    %v1317 = vpow.pop %v1316
    %v1318 = vmul.f32 %v1299, 1.442695
    %v1319 = vpow.pop %v1318
    %v1320 = vmul.f32 %v1300, 1.442695
    %v1321 = vpow.pop %v1320
    %v1322 = vmul.f32 %v1301, 1.442695
    %v1323 = vpow.pop %v1322
    %v1324 = vmul.f32 %v1302, 1.442695
    %v1325 = vpow.pop %v1324
    %v1326 = vmul.f32 %v1303, 1.442695
    %v1327 = vpow.pop %v1326
    %v1328 = vmul.f32 %v1304, 1.442695
    %v1329 = vpow.pop %v1328
    %v1330 = vmul.f32 %v1305, 1.442695
    %v1331 = vpow.pop %v1330
    %v1332 = vmul.f32 %v1306, 1.442695
    %v1333 = vpow.pop %v1332
    %v1334 = vmul.f32 %v1307, 1.442695
    %v1335 = vpow.pop %v1334
    %v1336 = vmul.f32 %v1308, 1.442695
    %v1337 = vpow.pop %v1336
    %v1338 = vmul.f32 %v1309, 1.442695
    %v1339 = vpow.pop %v1338
    %v1340 = vmul.f32 %v1310, 1.442695
    %v1341 = vpow.pop %v1340
    %v1342 = vmul.f32 %v1311, 1.442695
    %v1343 = vpow.pop %v1342
    %1344 = vadd.xlane.f32.xlu0 %v1313
    %v1345 = vpop.xlane.xlu0 %1344
    %1346 = vadd.xlane.f32.xlu0 %v1315
    %v1347 = vpop.xlane.xlu0 %1346
    %1348 = vadd.xlane.f32.xlu0 %v1317
    %v1349 = vpop.xlane.xlu0 %1348
    %1350 = vadd.xlane.f32.xlu0 %v1319
    %v1351 = vpop.xlane.xlu0 %1350
    %1352 = vadd.xlane.f32.xlu0 %v1321
    %v1353 = vpop.xlane.xlu0 %1352
    %1354 = vadd.xlane.f32.xlu0 %v1323
    %v1355 = vpop.xlane.xlu0 %1354
    %1356 = vadd.xlane.f32.xlu0 %v1325
    %v1357 = vpop.xlane.xlu0 %1356
    %1358 = vadd.xlane.f32.xlu0 %v1327
    %v1359 = vpop.xlane.xlu0 %1358
    %1360 = vadd.xlane.f32.xlu0 %v1329
    %v1361 = vpop.xlane.xlu0 %1360
    %1362 = vadd.xlane.f32.xlu0 %v1331
    %v1363 = vpop.xlane.xlu0 %1362
    %1364 = vadd.xlane.f32.xlu0 %v1333
    %v1365 = vpop.xlane.xlu0 %1364
    %1366 = vadd.xlane.f32.xlu0 %v1335
    %v1367 = vpop.xlane.xlu0 %1366
    %1368 = vadd.xlane.f32.xlu0 %v1337
    %v1369 = vpop.xlane.xlu0 %1368
    %1370 = vadd.xlane.f32.xlu0 %v1339
    %v1371 = vpop.xlane.xlu0 %1370
    %1372 = vadd.xlane.f32.xlu0 %v1341
    %v1373 = vpop.xlane.xlu0 %1372
    %1374 = vadd.xlane.f32.xlu0 %v1343
    %v1375 = vpop.xlane.xlu0 %1374
    %v1376 = vlog2.pop %v1345
    %v1377 = vmul.f32 %v1376, 0.6931472
    %v1378 = vlog2.pop %v1347
    %v1379 = vmul.f32 %v1378, 0.6931472
    %v1380 = vlog2.pop %v1349
    %v1381 = vmul.f32 %v1380, 0.6931472
    %v1382 = vlog2.pop %v1351
    %v1383 = vmul.f32 %v1382, 0.6931472
    %v1384 = vlog2.pop %v1353
    %v1385 = vmul.f32 %v1384, 0.6931472
    %v1386 = vlog2.pop %v1355
    %v1387 = vmul.f32 %v1386, 0.6931472
    %v1388 = vlog2.pop %v1357
    %v1389 = vmul.f32 %v1388, 0.6931472
    %v1390 = vlog2.pop %v1359
    %v1391 = vmul.f32 %v1390, 0.6931472
    %v1392 = vlog2.pop %v1361
    %v1393 = vmul.f32 %v1392, 0.6931472
    %v1394 = vlog2.pop %v1363
    %v1395 = vmul.f32 %v1394, 0.6931472
    %v1396 = vlog2.pop %v1365
    %v1397 = vmul.f32 %v1396, 0.6931472
    %v1398 = vlog2.pop %v1367
    %v1399 = vmul.f32 %v1398, 0.6931472
    %v1400 = vlog2.pop %v1369
    %v1401 = vmul.f32 %v1400, 0.6931472
    %v1402 = vlog2.pop %v1371
    %v1403 = vmul.f32 %v1402, 0.6931472
    %v1404 = vlog2.pop %v1373
    %v1405 = vmul.f32 %v1404, 0.6931472
    %v1406 = vlog2.pop %v1375
    %v1407 = vmul.f32 %v1406, 0.6931472
    %v1408 = vsub.f32 %v1296, %v1377
    %v1409 = vsub.f32 %v1297, %v1379
    %v1410 = vsub.f32 %v1298, %v1381
    %v1411 = vsub.f32 %v1299, %v1383
    %v1412 = vsub.f32 %v1300, %v1385
    %v1413 = vsub.f32 %v1301, %v1387
    %v1414 = vsub.f32 %v1302, %v1389
    %v1415 = vsub.f32 %v1303, %v1391
    %v1416 = vsub.f32 %v1304, %v1393
    %v1417 = vsub.f32 %v1305, %v1395
    %v1418 = vsub.f32 %v1306, %v1397
    %v1419 = vsub.f32 %v1307, %v1399
    %v1420 = vsub.f32 %v1308, %v1401
    %v1421 = vsub.f32 %v1309, %v1403
    %v1422 = vsub.f32 %v1310, %v1405
    %v1423 = vsub.f32 %v1311, %v1407
    %1424 = vst [vmem:[#allocation11] sm:$0xff] %v1408
    %1425 = vst [vmem:[#allocation11 + $0x8] sm:$0xff] %v1409
    %1426 = vst [vmem:[#allocation11 + $0x10] sm:$0xff] %v1410
    %1427 = vst [vmem:[#allocation11 + $0x18] sm:$0xff] %v1411
    %1428 = vst [vmem:[#allocation11 + $0x20] sm:$0xff] %v1412
    %1429 = vst [vmem:[#allocation11 + $0x28] sm:$0xff] %v1413
    %1430 = vst [vmem:[#allocation11 + $0x30] sm:$0xff] %v1414
    %1431 = vst [vmem:[#allocation11 + $0x38] sm:$0xff] %v1415
    %1432 = vst [vmem:[#allocation11 + $0x40] sm:$0xff] %v1416
    %1433 = vst [vmem:[#allocation11 + $0x48] sm:$0xff] %v1417
    %1434 = vst [vmem:[#allocation11 + $0x50] sm:$0xff] %v1418
    %1435 = vst [vmem:[#allocation11 + $0x58] sm:$0xff] %v1419
    %1436 = vst [vmem:[#allocation11 + $0x60] sm:$0xff] %v1420
    %1437 = vst [vmem:[#allocation11 + $0x68] sm:$0xff] %v1421
    %1438 = vst [vmem:[#allocation11 + $0x70] sm:$0xff] %v1422
    %1439 = vst [vmem:[#allocation11 + $0x78] sm:$0xff] %v1423
    // Predicated region
    $region54: #{tpu_custom_call.1} parent=1 // pred_check
      _
    $region55: #{tpu_custom_call.1} parent=1 // pred_check_branch
      %1441 = sbr.rel (0) target = $region57
    $region56: #{tpu_custom_call.1} parent=1 // pred_region
      %s1443 = ssub.s32 2048, 2048
      %1444 = vsyncadd [#allocation4], %s1443
      %s1445 = sshll.u32 [#allocation11], 4
      %s1446 = int_to_ptr.vmem [resolvable:$true] %s1445
      %1451 = dma.vmem_to_hbm [thread:$0]  %s1446, 2048, %s8, [#allocation4], 128, 128, 8
    $region57: #{tpu_custom_call.1} parent=1 // pred_fallthru
      _
    // Predicated region
    $region58: #{tpu_custom_call.1} parent=1 // pred_check
      _
    $region59: #{tpu_custom_call.1} parent=1 // pred_check_branch
      %1453 = sbr.rel (0) target = $region61
    $region60: #{tpu_custom_call.1} parent=1 // pred_region
      %1454 = dma.done [#allocation4], 2048
    $region61: #{tpu_custom_call.1} parent=1 // pred_fallthru
      _
    %1455 = vsyncpa [#allocation3], 1
    %1456 = vsyncpa [#allocation6], 1
    %1457 = vsyncpa [#allocation9], 1
    %1458 = vsyncpa [#allocation4], 1

</llo_original>
